<compile_context>
chip_gen: v6e
topology: v6e:2x2x1
jax: 0.10.0
libtpu: 0.0.40
codegen_flags: <defaults>
</compile_context>

<pallas_src>
import functools
import math

import jax
import jax.numpy as jnp
from jax import lax
from jax.experimental import pallas as pl
from jax.experimental.pallas import tpu as pltpu

EPS = 1e-5          # LayerNorm epsilon
NEG_INF = -1e9      # masked-logit value (matches the PyTorch reference)

# Matmul-operand dtype. f32 keeps the toy-size self-test tight; flip to
# jnp.bfloat16 on v6e/v7x at production sizes (accumulation is always f32 via
# preferred_element_type; the wrapper already casts the weights).
MATMUL_DTYPE = jnp.float32

VMEM_LIMIT_BYTES = 64 * 1024 * 1024   # safe on v5e/v6e (128 MiB) and v7x (64 MiB)


def _row_tile(n):
    """Row-tile size for the L (sequence) grid axis: full when small, else the
    largest divisor in {256,...,8} so blocks stay (8,128)-friendly."""
    if n <= 256:
        return n
    for t in (256, 128, 64, 32, 16, 8):
        if n % t == 0:
            return t
    return n


# ----------------------------------------------------------------------------
# Multi-head attention + residual + LayerNorm (fused).
# Grid: (batch, Lq-tile); both axes "parallel".
# ----------------------------------------------------------------------------
def _mha_ln_kernel(q_ref, kv_ref, mask_ref,
                   wq_ref, bq_ref, wk_ref, bk_ref, wv_ref, bv_ref,
                   wo_ref, bo_ref, gamma_ref, beta_ref,
                   out_ref, probs_ref, *, n_heads):
    x_q = q_ref[0]                      # (Tq, D) f32 — also the residual input
    x_kv = kv_ref[0]                    # (Lk, D) f32
    tq, d_model = x_q.shape
    d_head = d_model // n_heads
    scale = 1.0 / math.sqrt(d_head)

    # Hoisted mask compare (one compare for all heads); applied as a select so
    # masked logits are exactly NEG_INF like the reference.
    masked = mask_ref[0] == 0           # (Tq, Lk) or (1, Lk) bool

    # Full-width projections: (T, D) @ (D, D) fills the MXU.
    xq_m = x_q.astype(MATMUL_DTYPE)
    xkv_m = x_kv.astype(MATMUL_DTYPE)
    q = jnp.dot(xq_m, wq_ref[...], preferred_element_type=jnp.float32) + bq_ref[...]
    k = jnp.dot(xkv_m, wk_ref[...], preferred_element_type=jnp.float32) + bk_ref[...]
    v = jnp.dot(xkv_m, wv_ref[...], preferred_element_type=jnp.float32) + bv_ref[...]

    # Fold the softmax scale into Q once.
    q = q * scale

    # Per-head attention.  Heads are independent on the MXU, so lane-sliced 2-D
    # matmuls are the same MXU work as a head-batched einsum but need no
    # (H, L, dh) broadcast/relayout.  The output projection is accumulated per
    # head (K-chunked full-depth matmul) -> no ctx scratch, no narrow stores.
    acc = jnp.zeros((tq, d_model), jnp.float32)
    for h in range(n_heads):
        lo, hi = h * d_head, (h + 1) * d_head
        q_h = q[:, lo:hi].astype(MATMUL_DTYPE)             # (Tq, dh)
        k_h = k[:, lo:hi].astype(MATMUL_DTYPE)             # (Lk, dh)
        v_h = v[:, lo:hi].astype(MATMUL_DTYPE)             # (Lk, dh)

        # scores_h = q_h @ k_h^T  (contract the dh axis of both operands)
        s = lax.dot_general(q_h, k_h, (((1,), (1,)), ((), ())),
                            preferred_element_type=jnp.float32)    # (Tq, Lk)
        s = jnp.where(masked, NEG_INF, s)

        m = jnp.max(s, axis=-1, keepdims=True)
        e = jnp.exp(s - m)
        den = jnp.sum(e, axis=-1, keepdims=True)
        p_h = e * pl.reciprocal(den, approx=True)           # EUP reciprocal

        probs_ref[0, h] = p_h                               # (Tq, Lk): lane-dense

        ctx_h = jnp.dot(p_h.astype(MATMUL_DTYPE), v_h,
                        preferred_element_type=jnp.float32)         # (Tq, dh)
        acc = acc + jnp.dot(ctx_h.astype(MATMUL_DTYPE), wo_ref[lo:hi, :],
                            preferred_element_type=jnp.float32)     # (Tq, D)

    attn = acc + bo_ref[...]

    # Fused residual add + LayerNorm (two-pass variance, rsqrt on the EUP).
    resid = x_q + attn
    mean = jnp.mean(resid, axis=-1, keepdims=True)
    cent = resid - mean
    var = jnp.mean(cent * cent, axis=-1, keepdims=True)
    out_ref[0] = cent * lax.rsqrt(var + EPS) * gamma_ref[...] + beta_ref[...]


def mha_add_layernorm(q, kv, mask, p, ln, n_heads):
    """Returns (LayerNorm(q + MHA(q, kv, kv, mask)), attention_probs)."""
    B, Lq, D = q.shape
    Lk = kv.shape[1]
    if mask.ndim == 4:                   # PyTorch layout (B, 1, Mq, Lk)
        mask = mask.reshape(B, mask.shape[2], Lk)
    Mq = mask.shape[1]                   # Lq (self-attn) or 1 (cross-attn)

    tl = _row_tile(Lq)
    n_t = Lq // tl
    cast = lambda a: a.astype(MATMUL_DTYPE)

    per_tile3 = lambda b, t: (b, t, 0)
    batch3 = lambda b, t: (b, 0, 0)
    const2 = lambda b, t: (0, 0)

    if Mq == 1:
        mask_spec = pl.BlockSpec((1, 1, Lk), batch3)         # broadcast rows
    else:
        mask_spec = pl.BlockSpec((1, tl, Lk), per_tile3)     # causal rows track q

    out, probs = pl.pallas_call(
        functools.partial(_mha_ln_kernel, n_heads=n_heads),
        out_shape=(
            jax.ShapeDtypeStruct((B, Lq, D), jnp.float32),
            jax.ShapeDtypeStruct((B, n_heads, Lq, Lk), jnp.float32),
        ),
        grid_spec=pltpu.PrefetchScalarGridSpec(
            num_scalar_prefetch=0,
            grid=(B, n_t),
            in_specs=[
                pl.BlockSpec((1, tl, D), per_tile3),         # q rows (+ residual)
                pl.BlockSpec((1, Lk, D), batch3),            # kv
                mask_spec,                                   # mask
                pl.BlockSpec((D, D), const2),                # Wq
                pl.BlockSpec((1, D), const2),                # bq
                pl.BlockSpec((D, D), const2),                # Wk
                pl.BlockSpec((1, D), const2),                # bk
                pl.BlockSpec((D, D), const2),                # Wv
                pl.BlockSpec((1, D), const2),                # bv
                pl.BlockSpec((D, D), const2),                # Wo
                pl.BlockSpec((1, D), const2),                # bo
                pl.BlockSpec((1, D), const2),                # gamma
                pl.BlockSpec((1, D), const2),                # beta
            ],
            out_specs=[
                pl.BlockSpec((1, tl, D), per_tile3),
                pl.BlockSpec((1, n_heads, tl, Lk), lambda b, t: (b, 0, t, 0)),
            ],
        ),
        compiler_params=pltpu.CompilerParams(
            dimension_semantics=("parallel", "parallel"),
            vmem_limit_bytes=VMEM_LIMIT_BYTES),
    )(q, kv, mask,
      cast(p["wq"]), p["bq"], cast(p["wk"]), p["bk"], cast(p["wv"]), p["bv"],
      cast(p["wo"]), p["bo"], ln["gamma"], ln["beta"])
    return out, probs


# ----------------------------------------------------------------------------
# Position-wise FFN + residual + LayerNorm (fused).
# Grid: (batch, L-tile); both axes "parallel".
# ----------------------------------------------------------------------------
def _ffn_ln_kernel(x_ref, w1_ref, b1_ref, w2_ref, b2_ref, g_ref, beta_ref, o_ref):
    x = x_ref[0]                                            # (T, D) f32
    xm = x.astype(MATMUL_DTYPE)
    h = jnp.dot(xm, w1_ref[...], preferred_element_type=jnp.float32) + b1_ref[...]
    h = jnp.maximum(h, 0.0)
    y = jnp.dot(h.astype(MATMUL_DTYPE), w2_ref[...],
                preferred_element_type=jnp.float32) + b2_ref[...]
    resid = x + y
    mean = jnp.mean(resid, axis=-1, keepdims=True)
    cent = resid - mean
    var = jnp.mean(cent * cent, axis=-1, keepdims=True)
    o_ref[0] = cent * lax.rsqrt(var + EPS) * g_ref[...] + beta_ref[...]


def ffn_add_layernorm(x, ffn, ln):
    B, L, D = x.shape
    F = ffn["w1"].shape[1]
    tl = _row_tile(L)
    n_t = L // tl

    per_tile3 = lambda b, t: (b, t, 0)
    const2 = lambda b, t: (0, 0)

    return pl.pallas_call(
        _ffn_ln_kernel,
        out_shape=jax.ShapeDtypeStruct((B, L, D), jnp.float32),
        grid_spec=pltpu.PrefetchScalarGridSpec(
            num_scalar_prefetch=0,
            grid=(B, n_t),
            in_specs=[
                pl.BlockSpec((1, tl, D), per_tile3),
                pl.BlockSpec((D, F), const2),
                pl.BlockSpec((1, F), const2),
                pl.BlockSpec((F, D), const2),
                pl.BlockSpec((1, D), const2),
                pl.BlockSpec((1, D), const2),
                pl.BlockSpec((1, D), const2),
            ],
            out_specs=pl.BlockSpec((1, tl, D), per_tile3),
        ),
        compiler_params=pltpu.CompilerParams(
            dimension_semantics=("parallel", "parallel"),
            vmem_limit_bytes=VMEM_LIMIT_BYTES),
    )(x, ffn["w1"].astype(MATMUL_DTYPE), ffn["b1"],
      ffn["w2"].astype(MATMUL_DTYPE), ffn["b2"], ln["gamma"], ln["beta"])


# ----------------------------------------------------------------------------
# DecoderBlock forward (eval mode; dropout = identity)
# ----------------------------------------------------------------------------
def decoder_block_forward(trg, src, trg_mask, src_mask, params, n_heads):
    # masked self-attention, fused with norm1(trg + attn)
    norm1_out, masked_attention_probs = mha_add_layernorm(
        trg, trg, trg_mask, params["masked_attention"], params["norm1"], n_heads)
    # encoder-decoder cross-attention, fused with norm2(norm1_out + attn)
    norm2_out, attention_probs = mha_add_layernorm(
        norm1_out, src, src_mask, params["attention"], params["norm2"], n_heads)
    # position-wise feed-forward, fused with norm3(norm2_out + ffn)
    out = ffn_add_layernorm(norm2_out, params["ffn"], params["norm3"])
    return out, masked_attention_probs, attention_probs


# ----------------------------------------------------------------------------
# Deterministic parameter init
# ----------------------------------------------------------------------------
def init_params(key, d_model, d_ffn):
    keys = jax.random.split(key, 12)

    def linear(kw, kb, din, dout):
        s = 1.0 / math.sqrt(din)
        w = jax.random.uniform(kw, (din, dout), jnp.float32, -s, s)
        b = jax.random.uniform(kb, (1, dout), jnp.float32, -s, s)
        return w, b

    def mha(k):
        ks = jax.random.split(k, 8)
        p = {}
        for i, name in enumerate(["q", "k", "v", "o"]):
            w, b = linear(ks[2 * i], ks[2 * i + 1], d_model, d_model)
            p["w" + name], p["b" + name] = w, b
        return p

    def ln():
        return {"gamma": jnp.ones((1, d_model), jnp.float32),
                "beta": jnp.zeros((1, d_model), jnp.float32)}

    w1, b1 = linear(keys[2], keys[3], d_model, d_ffn)
    w2, b2 = linear(keys[4], keys[5], d_ffn, d_model)
    return {
        "masked_attention": mha(keys[0]),
        "attention": mha(keys[1]),
        "norm1": ln(), "norm2": ln(), "norm3": ln(),
        "ffn": {"w1": w1, "b1": b1, "w2": w2, "b2": b2},
    }


# ----------------------------------------------------------------------------
# Pure-JAX reference for correctness check
# ----------------------------------------------------------------------------
def _ref_mha(q, kv, mask, p, n_heads):
    B, Lq, D = q.shape
    Lk = kv.shape[1]
    dh = D // n_heads
    Q = q @ p["wq"] + p["bq"]
    K = kv @ p["wk"] + p["bk"]
    V = kv @ p["wv"] + p["bv"]
    Q = Q.reshape(B, Lq, n_heads, dh).transpose(0, 2, 1, 3)
    K = K.reshape(B, Lk, n_heads, dh).transpose(0, 2, 1, 3)
    V = V.reshape(B, Lk, n_heads, dh).transpose(0, 2, 1, 3)
    s = jnp.einsum("bhqd,bhkd->bhqk", Q, K) / math.sqrt(dh)
    s = jnp.where(mask == 0, NEG_INF, s)       # mask (B, 1, Mq, Lk) broadcasts
    probs = jax.nn.softmax(s, axis=-1)
    o = jnp.einsum("bhqk,bhkd->bhqd", probs, V)
    o = o.transpose(0, 2, 1, 3).reshape(B, Lq, D)
    return o @ p["wo"] + p["bo"], probs


def _ref_ln(v, g, b):
    m = v.mean(-1, keepdims=True)
    var = ((v - m) ** 2).mean(-1, keepdims=True)
    return (v - m) / jnp.sqrt(var + EPS) * g + b


def reference_forward(trg, src, trg_mask, src_mask, params, n_heads):
    sa, mp = _ref_mha(trg, trg, trg_mask, params["masked_attention"], n_heads)
    n1 = _ref_ln(trg + sa, params["norm1"]["gamma"], params["norm1"]["beta"])
    ca, ap = _ref_mha(n1, src, src_mask, params["attention"], n_heads)
    n2 = _ref_ln(n1 + ca, params["norm2"]["gamma"], params["norm2"]["beta"])
    f = params["ffn"]
    ff = jnp.maximum(n2 @ f["w1"] + f["b1"], 0.0) @ f["w2"] + f["b2"]
    out = _ref_ln(n2 + ff, params["norm3"]["gamma"], params["norm3"]["beta"])
    return out, mp, ap


if __name__ == "__main__":
    B, Lq, Lk = 2, 8, 8
    d_model, d_ffn, n_heads = 32, 64, 4

    key = jax.random.PRNGKey(0)
    k_trg, k_src, k_par = jax.random.split(key, 3)

    trg = jax.random.normal(k_trg, (B, Lq, d_model), jnp.float32)
    src = jax.random.normal(k_src, (B, Lk, d_model), jnp.float32)

    # PyTorch-layout masks: causal (B, 1, Lq, Lq), full source (B, 1, 1, Lk)
    trg_mask = jnp.broadcast_to(
        jnp.tril(jnp.ones((Lq, Lq), jnp.float32)), (B, 1, Lq, Lq))
    src_mask = jnp.ones((B, 1, 1, Lk), jnp.float32)

    params = init_params(k_par, d_model, d_ffn)

    out, masked_probs, cross_probs = decoder_block_forward(
        trg, src, trg_mask, src_mask, params, n_heads)
    jax.block_until_ready((out, masked_probs, cross_probs))

    r_out, r_mp, r_cp = reference_forward(
        trg, src, trg_mask, src_mask, params, n_heads)
    assert out.shape == (B, Lq, d_model)
    assert masked_probs.shape == (B, n_heads, Lq, Lq)
    assert cross_probs.shape == (B, n_heads, Lq, Lk)
    # Tolerances account for the EUP approximate-reciprocal softmax denominator.
    assert jnp.allclose(masked_probs, r_mp, atol=2e-3, rtol=2e-3)
    assert jnp.allclose(cross_probs, r_cp, atol=2e-3, rtol=2e-3)
    assert jnp.allclose(out, r_out, atol=5e-3, rtol=5e-3)

    print("KERNEL_OK")
</pallas_src>

<mosaic_0001>
module attributes {stable_mosaic.version = 11 : i64} {
  func.func @_mha_ln_kernel(%arg0: i32, %arg1: i32, %arg2: memref<1x8x32xf32, #tpu.memory_space<vmem>>, %arg3: memref<1x8x32xf32, #tpu.memory_space<vmem>>, %arg4: memref<1x8x8xf32, #tpu.memory_space<vmem>>, %arg5: memref<32x32xf32, #tpu.memory_space<vmem>>, %arg6: memref<1x32xf32, #tpu.memory_space<vmem>>, %arg7: memref<32x32xf32, #tpu.memory_space<vmem>>, %arg8: memref<1x32xf32, #tpu.memory_space<vmem>>, %arg9: memref<32x32xf32, #tpu.memory_space<vmem>>, %arg10: memref<1x32xf32, #tpu.memory_space<vmem>>, %arg11: memref<32x32xf32, #tpu.memory_space<vmem>>, %arg12: memref<1x32xf32, #tpu.memory_space<vmem>>, %arg13: memref<1x32xf32, #tpu.memory_space<vmem>>, %arg14: memref<1x32xf32, #tpu.memory_space<vmem>>, %arg15: memref<1x8x32xf32, #tpu.memory_space<vmem>>, %arg16: memref<1x4x8x8xf32, #tpu.memory_space<vmem>>) attributes {dimension_semantics = [#tpu.dimension_semantics<parallel>, #tpu.dimension_semantics<parallel>], iteration_bounds = array<i64: 2, 1>, scalar_prefetch = 0 : i64, scratch_operands = 0 : i64, tpu.core_type = #tpu.core_type<tc>, window_params = [{transform_indices = @transform_0, window_bounds = array<i64: 1, 8, 32>}, {transform_indices = @transform_1, window_bounds = array<i64: 1, 8, 32>}, {transform_indices = @transform_2, window_bounds = array<i64: 1, 8, 8>}, {pipeline_mode = #tpu.pipeline_mode<synchronous>, transform_indices = @transform_3, window_bounds = array<i64: 32, 32>}, {pipeline_mode = #tpu.pipeline_mode<synchronous>, transform_indices = @transform_4, window_bounds = array<i64: 1, 32>}, {pipeline_mode = #tpu.pipeline_mode<synchronous>, transform_indices = @transform_5, window_bounds = array<i64: 32, 32>}, {pipeline_mode = #tpu.pipeline_mode<synchronous>, transform_indices = @transform_6, window_bounds = array<i64: 1, 32>}, {pipeline_mode = #tpu.pipeline_mode<synchronous>, transform_indices = @transform_7, window_bounds = array<i64: 32, 32>}, {pipeline_mode = #tpu.pipeline_mode<synchronous>, transform_indices = @transform_8, window_bounds = array<i64: 1, 32>}, {pipeline_mode = #tpu.pipeline_mode<synchronous>, transform_indices = @transform_9, window_bounds = array<i64: 32, 32>}, {pipeline_mode = #tpu.pipeline_mode<synchronous>, transform_indices = @transform_10, window_bounds = array<i64: 1, 32>}, {pipeline_mode = #tpu.pipeline_mode<synchronous>, transform_indices = @transform_11, window_bounds = array<i64: 1, 32>}, {pipeline_mode = #tpu.pipeline_mode<synchronous>, transform_indices = @transform_12, window_bounds = array<i64: 1, 32>}, {transform_indices = @transform_13, window_bounds = array<i64: 1, 8, 32>}, {transform_indices = @transform_14, window_bounds = array<i64: 1, 4, 8, 8>}]} {
    %c0 = arith.constant 0 : index
    %c0_0 = arith.constant 0 : index
    %c0_1 = arith.constant 0 : index
    %0 = vector.load %arg2[%c0, %c0_0, %c0_1] : memref<1x8x32xf32, #tpu.memory_space<vmem>>, vector<1x8x32xf32>
    %1 = vector.shape_cast %0 : vector<1x8x32xf32> to vector<8x32xf32>
    %c0_2 = arith.constant 0 : index
    %c0_3 = arith.constant 0 : index
    %c0_4 = arith.constant 0 : index
    %2 = vector.load %arg3[%c0_2, %c0_3, %c0_4] : memref<1x8x32xf32, #tpu.memory_space<vmem>>, vector<1x8x32xf32>
    %3 = vector.shape_cast %2 : vector<1x8x32xf32> to vector<8x32xf32>
    %c0_5 = arith.constant 0 : index
    %c0_6 = arith.constant 0 : index
    %c0_7 = arith.constant 0 : index
    %4 = vector.load %arg4[%c0_5, %c0_6, %c0_7] : memref<1x8x8xf32, #tpu.memory_space<vmem>>, vector<1x8x8xf32>
    %5 = vector.shape_cast %4 : vector<1x8x8xf32> to vector<8x8xf32>
    %cst = arith.constant 0.000000e+00 : f32
    %6 = vector.broadcast %cst : f32 to vector<8x8xf32>
    %7 = arith.cmpf oeq, %5, %6 : vector<8x8xf32>
    %c0_8 = arith.constant 0 : index
    %c0_9 = arith.constant 0 : index
    %8 = vector.load %arg5[%c0_8, %c0_9] : memref<32x32xf32, #tpu.memory_space<vmem>>, vector<32x32xf32>
    %cst_10 = arith.constant dense<0.000000e+00> : vector<8x32xf32>
    %9 = tpu.matmul %1, %8, %cst_10 {dimension_numbers = #tpu.dot_dimension_numbers<[1], [0], [0], [1], [0, 0, 1, 1], [], []>} : vector<8x32xf32>, vector<32x32xf32>, vector<8x32xf32> -> vector<8x32xf32>
    %c0_11 = arith.constant 0 : index
    %c0_12 = arith.constant 0 : index
    %10 = vector.load %arg6[%c0_11, %c0_12] : memref<1x32xf32, #tpu.memory_space<vmem>>, vector<1x32xf32>
    %11 = vector.broadcast %10 : vector<1x32xf32> to vector<8x32xf32>
    %12 = arith.addf %9, %11 : vector<8x32xf32>
    %c0_13 = arith.constant 0 : index
    %c0_14 = arith.constant 0 : index
    %13 = vector.load %arg7[%c0_13, %c0_14] : memref<32x32xf32, #tpu.memory_space<vmem>>, vector<32x32xf32>
    %cst_15 = arith.constant dense<0.000000e+00> : vector<8x32xf32>
    %14 = tpu.matmul %3, %13, %cst_15 {dimension_numbers = #tpu.dot_dimension_numbers<[1], [0], [0], [1], [0, 0, 1, 1], [], []>} : vector<8x32xf32>, vector<32x32xf32>, vector<8x32xf32> -> vector<8x32xf32>
    %c0_16 = arith.constant 0 : index
    %c0_17 = arith.constant 0 : index
    %15 = vector.load %arg8[%c0_16, %c0_17] : memref<1x32xf32, #tpu.memory_space<vmem>>, vector<1x32xf32>
    %16 = vector.broadcast %15 : vector<1x32xf32> to vector<8x32xf32>
    %17 = arith.addf %14, %16 : vector<8x32xf32>
    %c0_18 = arith.constant 0 : index
    %c0_19 = arith.constant 0 : index
    %18 = vector.load %arg9[%c0_18, %c0_19] : memref<32x32xf32, #tpu.memory_space<vmem>>, vector<32x32xf32>
    %cst_20 = arith.constant dense<0.000000e+00> : vector<8x32xf32>
    %19 = tpu.matmul %3, %18, %cst_20 {dimension_numbers = #tpu.dot_dimension_numbers<[1], [0], [0], [1], [0, 0, 1, 1], [], []>} : vector<8x32xf32>, vector<32x32xf32>, vector<8x32xf32> -> vector<8x32xf32>
    %c0_21 = arith.constant 0 : index
    %c0_22 = arith.constant 0 : index
    %20 = vector.load %arg10[%c0_21, %c0_22] : memref<1x32xf32, #tpu.memory_space<vmem>>, vector<1x32xf32>
    %21 = vector.broadcast %20 : vector<1x32xf32> to vector<8x32xf32>
    %22 = arith.addf %19, %21 : vector<8x32xf32>
    %cst_23 = arith.constant 0.353553385 : f32
    %23 = vector.broadcast %cst_23 : f32 to vector<8x32xf32>
    %24 = arith.mulf %12, %23 : vector<8x32xf32>
    %cst_24 = arith.constant 0.000000e+00 : f32
    %25 = vector.broadcast %cst_24 : f32 to vector<8x32xf32>
    %26 = vector.extract_strided_slice %24 {offsets = [0, 0], sizes = [8, 8], strides = [1, 1]} : vector<8x32xf32> to vector<8x8xf32>
    %27 = vector.extract_strided_slice %17 {offsets = [0, 0], sizes = [8, 8], strides = [1, 1]} : vector<8x32xf32> to vector<8x8xf32>
    %28 = vector.extract_strided_slice %22 {offsets = [0, 0], sizes = [8, 8], strides = [1, 1]} : vector<8x32xf32> to vector<8x8xf32>
    %cst_25 = arith.constant dense<0.000000e+00> : vector<8x8xf32>
    %29 = tpu.matmul %26, %27, %cst_25 {dimension_numbers = #tpu.dot_dimension_numbers<[1], [1], [0], [0], [0, 0, 1, 0], [], []>} : vector<8x8xf32>, vector<8x8xf32>, vector<8x8xf32> -> vector<8x8xf32>
    %cst_26 = arith.constant -1.000000e+09 : f32
    %30 = vector.broadcast %cst_26 : f32 to vector<8x8xf32>
    %31 = arith.select %7, %30, %29 : vector<8x8xi1>, vector<8x8xf32>
    %cst_27 = arith.constant dense<0xFF800000> : vector<8xf32>
    %32 = vector.multi_reduction <maximumf>, %31, %cst_27 [1] : vector<8x8xf32> to vector<8xf32>
    %33 = vector.shape_cast %32 : vector<8xf32> to vector<8x1xf32>
    %34 = vector.broadcast %33 : vector<8x1xf32> to vector<8x8xf32>
    %35 = arith.subf %31, %34 : vector<8x8xf32>
    %36 = math.exp %35 : vector<8x8xf32>
    %cst_28 = arith.constant dense<0.000000e+00> : vector<8xf32>
    %37 = vector.multi_reduction <add>, %36, %cst_28 [1] : vector<8x8xf32> to vector<8xf32>
    %38 = vector.shape_cast %37 : vector<8xf32> to vector<8x1xf32>
    %39 = tpu.reciprocal %38 {approx = true} : vector<8x1xf32> -> vector<8x1xf32>
    %40 = vector.broadcast %39 : vector<8x1xf32> to vector<8x8xf32>
    %41 = arith.mulf %36, %40 : vector<8x8xf32>
    %c0_29 = arith.constant 0 : index
    %c0_30 = arith.constant 0 : index
    %c0_31 = arith.constant 0 : index
    %c0_32 = arith.constant 0 : index
    %42 = vector.load %arg16[%c0_29, %c0_30, %c0_31, %c0_32] : memref<1x4x8x8xf32, #tpu.memory_space<vmem>>, vector<1x1x8x8xf32>
    %43 = vector.shape_cast %42 : vector<1x1x8x8xf32> to vector<8x8xf32>
    %44 = vector.shape_cast %41 : vector<8x8xf32> to vector<1x1x8x8xf32>
    tpu.vector_store %arg16[%c0_29, %c0_30, %c0_31, %c0_32], %44 {strides = array<i32>} : memref<1x4x8x8xf32, #tpu.memory_space<vmem>>, vector<1x1x8x8xf32>,
    %cst_33 = arith.constant dense<0.000000e+00> : vector<8x8xf32>
    %45 = tpu.matmul %41, %28, %cst_33 {dimension_numbers = #tpu.dot_dimension_numbers<[1], [0], [0], [1], [0, 0, 1, 1], [], []>} : vector<8x8xf32>, vector<8x8xf32>, vector<8x8xf32> -> vector<8x8xf32>
    %c0_34 = arith.constant 0 : index
    %c0_35 = arith.constant 0 : index
    %46 = vector.load %arg11[%c0_34, %c0_35] : memref<32x32xf32, #tpu.memory_space<vmem>>, vector<8x32xf32>
    %cst_36 = arith.constant dense<0.000000e+00> : vector<8x32xf32>
    %47 = tpu.matmul %45, %46, %cst_36 {dimension_numbers = #tpu.dot_dimension_numbers<[1], [0], [0], [1], [0, 0, 1, 1], [], []>} : vector<8x8xf32>, vector<8x32xf32>, vector<8x32xf32> -> vector<8x32xf32>
    %48 = arith.addf %25, %47 : vector<8x32xf32>
    %49 = vector.extract_strided_slice %24 {offsets = [0, 8], sizes = [8, 8], strides = [1, 1]} : vector<8x32xf32> to vector<8x8xf32>
    %50 = vector.extract_strided_slice %17 {offsets = [0, 8], sizes = [8, 8], strides = [1, 1]} : vector<8x32xf32> to vector<8x8xf32>
    %51 = vector.extract_strided_slice %22 {offsets = [0, 8], sizes = [8, 8], strides = [1, 1]} : vector<8x32xf32> to vector<8x8xf32>
    %cst_37 = arith.constant dense<0.000000e+00> : vector<8x8xf32>
    %52 = tpu.matmul %49, %50, %cst_37 {dimension_numbers = #tpu.dot_dimension_numbers<[1], [1], [0], [0], [0, 0, 1, 0], [], []>} : vector<8x8xf32>, vector<8x8xf32>, vector<8x8xf32> -> vector<8x8xf32>
    %cst_38 = arith.constant -1.000000e+09 : f32
    %53 = vector.broadcast %cst_38 : f32 to vector<8x8xf32>
    %54 = arith.select %7, %53, %52 : vector<8x8xi1>, vector<8x8xf32>
    %cst_39 = arith.constant dense<0xFF800000> : vector<8xf32>
    %55 = vector.multi_reduction <maximumf>, %54, %cst_39 [1] : vector<8x8xf32> to vector<8xf32>
    %56 = vector.shape_cast %55 : vector<8xf32> to vector<8x1xf32>
    %57 = vector.broadcast %56 : vector<8x1xf32> to vector<8x8xf32>
    %58 = arith.subf %54, %57 : vector<8x8xf32>
    %59 = math.exp %58 : vector<8x8xf32>
    %cst_40 = arith.constant dense<0.000000e+00> : vector<8xf32>
    %60 = vector.multi_reduction <add>, %59, %cst_40 [1] : vector<8x8xf32> to vector<8xf32>
    %61 = vector.shape_cast %60 : vector<8xf32> to vector<8x1xf32>
    %62 = tpu.reciprocal %61 {approx = true} : vector<8x1xf32> -> vector<8x1xf32>
    %63 = vector.broadcast %62 : vector<8x1xf32> to vector<8x8xf32>
    %64 = arith.mulf %59, %63 : vector<8x8xf32>
    %c0_41 = arith.constant 0 : index
    %c1 = arith.constant 1 : index
    %c0_42 = arith.constant 0 : index
    %c0_43 = arith.constant 0 : index
    %65 = vector.load %arg16[%c0_41, %c1, %c0_42, %c0_43] : memref<1x4x8x8xf32, #tpu.memory_space<vmem>>, vector<1x1x8x8xf32>
    %66 = vector.shape_cast %65 : vector<1x1x8x8xf32> to vector<8x8xf32>
    %67 = vector.shape_cast %64 : vector<8x8xf32> to vector<1x1x8x8xf32>
    tpu.vector_store %arg16[%c0_41, %c1, %c0_42, %c0_43], %67 {strides = array<i32>} : memref<1x4x8x8xf32, #tpu.memory_space<vmem>>, vector<1x1x8x8xf32>,
    %cst_44 = arith.constant dense<0.000000e+00> : vector<8x8xf32>
    %68 = tpu.matmul %64, %51, %cst_44 {dimension_numbers = #tpu.dot_dimension_numbers<[1], [0], [0], [1], [0, 0, 1, 1], [], []>} : vector<8x8xf32>, vector<8x8xf32>, vector<8x8xf32> -> vector<8x8xf32>
    %c8 = arith.constant 8 : index
    %c0_45 = arith.constant 0 : index
    %69 = vector.load %arg11[%c8, %c0_45] : memref<32x32xf32, #tpu.memory_space<vmem>>, vector<8x32xf32>
    %cst_46 = arith.constant dense<0.000000e+00> : vector<8x32xf32>
    %70 = tpu.matmul %68, %69, %cst_46 {dimension_numbers = #tpu.dot_dimension_numbers<[1], [0], [0], [1], [0, 0, 1, 1], [], []>} : vector<8x8xf32>, vector<8x32xf32>, vector<8x32xf32> -> vector<8x32xf32>
    %71 = arith.addf %48, %70 : vector<8x32xf32>
    %72 = vector.extract_strided_slice %24 {offsets = [0, 16], sizes = [8, 8], strides = [1, 1]} : vector<8x32xf32> to vector<8x8xf32>
    %73 = vector.extract_strided_slice %17 {offsets = [0, 16], sizes = [8, 8], strides = [1, 1]} : vector<8x32xf32> to vector<8x8xf32>
    %74 = vector.extract_strided_slice %22 {offsets = [0, 16], sizes = [8, 8], strides = [1, 1]} : vector<8x32xf32> to vector<8x8xf32>
    %cst_47 = arith.constant dense<0.000000e+00> : vector<8x8xf32>
    %75 = tpu.matmul %72, %73, %cst_47 {dimension_numbers = #tpu.dot_dimension_numbers<[1], [1], [0], [0], [0, 0, 1, 0], [], []>} : vector<8x8xf32>, vector<8x8xf32>, vector<8x8xf32> -> vector<8x8xf32>
    %cst_48 = arith.constant -1.000000e+09 : f32
    %76 = vector.broadcast %cst_48 : f32 to vector<8x8xf32>
    %77 = arith.select %7, %76, %75 : vector<8x8xi1>, vector<8x8xf32>
    %cst_49 = arith.constant dense<0xFF800000> : vector<8xf32>
    %78 = vector.multi_reduction <maximumf>, %77, %cst_49 [1] : vector<8x8xf32> to vector<8xf32>
    %79 = vector.shape_cast %78 : vector<8xf32> to vector<8x1xf32>
    %80 = vector.broadcast %79 : vector<8x1xf32> to vector<8x8xf32>
    %81 = arith.subf %77, %80 : vector<8x8xf32>
    %82 = math.exp %81 : vector<8x8xf32>
    %cst_50 = arith.constant dense<0.000000e+00> : vector<8xf32>
    %83 = vector.multi_reduction <add>, %82, %cst_50 [1] : vector<8x8xf32> to vector<8xf32>
    %84 = vector.shape_cast %83 : vector<8xf32> to vector<8x1xf32>
    %85 = tpu.reciprocal %84 {approx = true} : vector<8x1xf32> -> vector<8x1xf32>
    %86 = vector.broadcast %85 : vector<8x1xf32> to vector<8x8xf32>
    %87 = arith.mulf %82, %86 : vector<8x8xf32>
    %c0_51 = arith.constant 0 : index
    %c2 = arith.constant 2 : index
    %c0_52 = arith.constant 0 : index
    %c0_53 = arith.constant 0 : index
    %88 = vector.load %arg16[%c0_51, %c2, %c0_52, %c0_53] : memref<1x4x8x8xf32, #tpu.memory_space<vmem>>, vector<1x1x8x8xf32>
    %89 = vector.shape_cast %88 : vector<1x1x8x8xf32> to vector<8x8xf32>
    %90 = vector.shape_cast %87 : vector<8x8xf32> to vector<1x1x8x8xf32>
    tpu.vector_store %arg16[%c0_51, %c2, %c0_52, %c0_53], %90 {strides = array<i32>} : memref<1x4x8x8xf32, #tpu.memory_space<vmem>>, vector<1x1x8x8xf32>,
    %cst_54 = arith.constant dense<0.000000e+00> : vector<8x8xf32>
    %91 = tpu.matmul %87, %74, %cst_54 {dimension_numbers = #tpu.dot_dimension_numbers<[1], [0], [0], [1], [0, 0, 1, 1], [], []>} : vector<8x8xf32>, vector<8x8xf32>, vector<8x8xf32> -> vector<8x8xf32>
    %c16 = arith.constant 16 : index
    %c0_55 = arith.constant 0 : index
    %92 = vector.load %arg11[%c16, %c0_55] : memref<32x32xf32, #tpu.memory_space<vmem>>, vector<8x32xf32>
    %cst_56 = arith.constant dense<0.000000e+00> : vector<8x32xf32>
    %93 = tpu.matmul %91, %92, %cst_56 {dimension_numbers = #tpu.dot_dimension_numbers<[1], [0], [0], [1], [0, 0, 1, 1], [], []>} : vector<8x8xf32>, vector<8x32xf32>, vector<8x32xf32> -> vector<8x32xf32>
    %94 = arith.addf %71, %93 : vector<8x32xf32>
    %95 = vector.extract_strided_slice %24 {offsets = [0, 24], sizes = [8, 8], strides = [1, 1]} : vector<8x32xf32> to vector<8x8xf32>
    %96 = vector.extract_strided_slice %17 {offsets = [0, 24], sizes = [8, 8], strides = [1, 1]} : vector<8x32xf32> to vector<8x8xf32>
    %97 = vector.extract_strided_slice %22 {offsets = [0, 24], sizes = [8, 8], strides = [1, 1]} : vector<8x32xf32> to vector<8x8xf32>
    %cst_57 = arith.constant dense<0.000000e+00> : vector<8x8xf32>
    %98 = tpu.matmul %95, %96, %cst_57 {dimension_numbers = #tpu.dot_dimension_numbers<[1], [1], [0], [0], [0, 0, 1, 0], [], []>} : vector<8x8xf32>, vector<8x8xf32>, vector<8x8xf32> -> vector<8x8xf32>
    %cst_58 = arith.constant -1.000000e+09 : f32
    %99 = vector.broadcast %cst_58 : f32 to vector<8x8xf32>
    %100 = arith.select %7, %99, %98 : vector<8x8xi1>, vector<8x8xf32>
    %cst_59 = arith.constant dense<0xFF800000> : vector<8xf32>
    %101 = vector.multi_reduction <maximumf>, %100, %cst_59 [1] : vector<8x8xf32> to vector<8xf32>
    %102 = vector.shape_cast %101 : vector<8xf32> to vector<8x1xf32>
    %103 = vector.broadcast %102 : vector<8x1xf32> to vector<8x8xf32>
    %104 = arith.subf %100, %103 : vector<8x8xf32>
    %105 = math.exp %104 : vector<8x8xf32>
    %cst_60 = arith.constant dense<0.000000e+00> : vector<8xf32>
    %106 = vector.multi_reduction <add>, %105, %cst_60 [1] : vector<8x8xf32> to vector<8xf32>
    %107 = vector.shape_cast %106 : vector<8xf32> to vector<8x1xf32>
    %108 = tpu.reciprocal %107 {approx = true} : vector<8x1xf32> -> vector<8x1xf32>
    %109 = vector.broadcast %108 : vector<8x1xf32> to vector<8x8xf32>
    %110 = arith.mulf %105, %109 : vector<8x8xf32>
    %c0_61 = arith.constant 0 : index
    %c3 = arith.constant 3 : index
    %c0_62 = arith.constant 0 : index
    %c0_63 = arith.constant 0 : index
    %111 = vector.load %arg16[%c0_61, %c3, %c0_62, %c0_63] : memref<1x4x8x8xf32, #tpu.memory_space<vmem>>, vector<1x1x8x8xf32>
    %112 = vector.shape_cast %111 : vector<1x1x8x8xf32> to vector<8x8xf32>
    %113 = vector.shape_cast %110 : vector<8x8xf32> to vector<1x1x8x8xf32>
    tpu.vector_store %arg16[%c0_61, %c3, %c0_62, %c0_63], %113 {strides = array<i32>} : memref<1x4x8x8xf32, #tpu.memory_space<vmem>>, vector<1x1x8x8xf32>,
    %cst_64 = arith.constant dense<0.000000e+00> : vector<8x8xf32>
    %114 = tpu.matmul %110, %97, %cst_64 {dimension_numbers = #tpu.dot_dimension_numbers<[1], [0], [0], [1], [0, 0, 1, 1], [], []>} : vector<8x8xf32>, vector<8x8xf32>, vector<8x8xf32> -> vector<8x8xf32>
    %c24 = arith.constant 24 : index
    %c0_65 = arith.constant 0 : index
    %115 = vector.load %arg11[%c24, %c0_65] : memref<32x32xf32, #tpu.memory_space<vmem>>, vector<8x32xf32>
    %cst_66 = arith.constant dense<0.000000e+00> : vector<8x32xf32>
    %116 = tpu.matmul %114, %115, %cst_66 {dimension_numbers = #tpu.dot_dimension_numbers<[1], [0], [0], [1], [0, 0, 1, 1], [], []>} : vector<8x8xf32>, vector<8x32xf32>, vector<8x32xf32> -> vector<8x32xf32>
    %117 = arith.addf %94, %116 : vector<8x32xf32>
    %c0_67 = arith.constant 0 : index
    %c0_68 = arith.constant 0 : index
    %118 = vector.load %arg12[%c0_67, %c0_68] : memref<1x32xf32, #tpu.memory_space<vmem>>, vector<1x32xf32>
    %119 = vector.broadcast %118 : vector<1x32xf32> to vector<8x32xf32>
    %120 = arith.addf %117, %119 : vector<8x32xf32>
    %121 = arith.addf %1, %120 : vector<8x32xf32>
    %cst_69 = arith.constant dense<0.000000e+00> : vector<8xf32>
    %122 = vector.multi_reduction <add>, %121, %cst_69 [1] : vector<8x32xf32> to vector<8xf32>
    %123 = vector.shape_cast %122 : vector<8xf32> to vector<8x1xf32>
    %cst_70 = arith.constant 3.200000e+01 : f32
    %124 = vector.broadcast %cst_70 : f32 to vector<8x1xf32>
    %125 = arith.divf %123, %124 : vector<8x1xf32>
    %126 = vector.broadcast %125 : vector<8x1xf32> to vector<8x32xf32>
    %127 = arith.subf %121, %126 : vector<8x32xf32>
    %128 = arith.mulf %127, %127 : vector<8x32xf32>
    %cst_71 = arith.constant dense<0.000000e+00> : vector<8xf32>
    %129 = vector.multi_reduction <add>, %128, %cst_71 [1] : vector<8x32xf32> to vector<8xf32>
    %130 = vector.shape_cast %129 : vector<8xf32> to vector<8x1xf32>
    %cst_72 = arith.constant 3.200000e+01 : f32
    %131 = vector.broadcast %cst_72 : f32 to vector<8x1xf32>
    %132 = arith.divf %130, %131 : vector<8x1xf32>
    %cst_73 = arith.constant 9.99999974E-6 : f32
    %133 = vector.broadcast %cst_73 : f32 to vector<8x1xf32>
    %134 = arith.addf %132, %133 : vector<8x1xf32>
    %135 = math.rsqrt %134 : vector<8x1xf32>
    %136 = vector.broadcast %135 : vector<8x1xf32> to vector<8x32xf32>
    %137 = arith.mulf %127, %136 : vector<8x32xf32>
    %c0_74 = arith.constant 0 : index
    %c0_75 = arith.constant 0 : index
    %138 = vector.load %arg13[%c0_74, %c0_75] : memref<1x32xf32, #tpu.memory_space<vmem>>, vector<1x32xf32>
    %139 = vector.broadcast %138 : vector<1x32xf32> to vector<8x32xf32>
    %140 = arith.mulf %137, %139 : vector<8x32xf32>
    %c0_76 = arith.constant 0 : index
    %c0_77 = arith.constant 0 : index
    %141 = vector.load %arg14[%c0_76, %c0_77] : memref<1x32xf32, #tpu.memory_space<vmem>>, vector<1x32xf32>
    %142 = vector.broadcast %141 : vector<1x32xf32> to vector<8x32xf32>
    %143 = arith.addf %140, %142 : vector<8x32xf32>
    %c0_78 = arith.constant 0 : index
    %c0_79 = arith.constant 0 : index
    %c0_80 = arith.constant 0 : index
    %144 = vector.load %arg15[%c0_78, %c0_79, %c0_80] : memref<1x8x32xf32, #tpu.memory_space<vmem>>, vector<1x8x32xf32>
    %145 = vector.shape_cast %144 : vector<1x8x32xf32> to vector<8x32xf32>
    %146 = vector.shape_cast %143 : vector<8x32xf32> to vector<1x8x32xf32>
    tpu.vector_store %arg15[%c0_78, %c0_79, %c0_80], %146 {strides = array<i32>} : memref<1x8x32xf32, #tpu.memory_space<vmem>>, vector<1x8x32xf32>,
    return
  }
  func.func @transform_0(%arg0: i32, %arg1: i32) -> (i32, i32, i32) {
    %c0_i32 = arith.constant 0 : i32
    %c0_i32_0 = arith.constant 0 : i32
    return %arg0, %arg1, %c0_i32 : i32, i32, i32
  }
  func.func @transform_1(%arg0: i32, %arg1: i32) -> (i32, i32, i32) {
    %c0_i32 = arith.constant 0 : i32
    %c0_i32_0 = arith.constant 0 : i32
    %c0_i32_1 = arith.constant 0 : i32
    return %arg0, %c0_i32, %c0_i32_0 : i32, i32, i32
  }
  func.func @transform_2(%arg0: i32, %arg1: i32) -> (i32, i32, i32) {
    %c0_i32 = arith.constant 0 : i32
    %c0_i32_0 = arith.constant 0 : i32
    return %arg0, %arg1, %c0_i32 : i32, i32, i32
  }
  func.func @transform_3(%arg0: i32, %arg1: i32) -> (i32, i32) {
    %c0_i32 = arith.constant 0 : i32
    %c0_i32_0 = arith.constant 0 : i32
    %c0_i32_1 = arith.constant 0 : i32
    return %c0_i32, %c0_i32_0 : i32, i32
  }
  func.func @transform_4(%arg0: i32, %arg1: i32) -> (i32, i32) {
    %c0_i32 = arith.constant 0 : i32
    %c0_i32_0 = arith.constant 0 : i32
    %c0_i32_1 = arith.constant 0 : i32
    return %c0_i32, %c0_i32_0 : i32, i32
  }
  func.func @transform_5(%arg0: i32, %arg1: i32) -> (i32, i32) {
    %c0_i32 = arith.constant 0 : i32
    %c0_i32_0 = arith.constant 0 : i32
    %c0_i32_1 = arith.constant 0 : i32
    return %c0_i32, %c0_i32_0 : i32, i32
  }
  func.func @transform_6(%arg0: i32, %arg1: i32) -> (i32, i32) {
    %c0_i32 = arith.constant 0 : i32
    %c0_i32_0 = arith.constant 0 : i32
    %c0_i32_1 = arith.constant 0 : i32
    return %c0_i32, %c0_i32_0 : i32, i32
  }
  func.func @transform_7(%arg0: i32, %arg1: i32) -> (i32, i32) {
    %c0_i32 = arith.constant 0 : i32
    %c0_i32_0 = arith.constant 0 : i32
    %c0_i32_1 = arith.constant 0 : i32
    return %c0_i32, %c0_i32_0 : i32, i32
  }
  func.func @transform_8(%arg0: i32, %arg1: i32) -> (i32, i32) {
    %c0_i32 = arith.constant 0 : i32
    %c0_i32_0 = arith.constant 0 : i32
    %c0_i32_1 = arith.constant 0 : i32
    return %c0_i32, %c0_i32_0 : i32, i32
  }
  func.func @transform_9(%arg0: i32, %arg1: i32) -> (i32, i32) {
    %c0_i32 = arith.constant 0 : i32
    %c0_i32_0 = arith.constant 0 : i32
    %c0_i32_1 = arith.constant 0 : i32
    return %c0_i32, %c0_i32_0 : i32, i32
  }
  func.func @transform_10(%arg0: i32, %arg1: i32) -> (i32, i32) {
    %c0_i32 = arith.constant 0 : i32
    %c0_i32_0 = arith.constant 0 : i32
    %c0_i32_1 = arith.constant 0 : i32
    return %c0_i32, %c0_i32_0 : i32, i32
  }
  func.func @transform_11(%arg0: i32, %arg1: i32) -> (i32, i32) {
    %c0_i32 = arith.constant 0 : i32
    %c0_i32_0 = arith.constant 0 : i32
    %c0_i32_1 = arith.constant 0 : i32
    return %c0_i32, %c0_i32_0 : i32, i32
  }
  func.func @transform_12(%arg0: i32, %arg1: i32) -> (i32, i32) {
    %c0_i32 = arith.constant 0 : i32
    %c0_i32_0 = arith.constant 0 : i32
    %c0_i32_1 = arith.constant 0 : i32
    return %c0_i32, %c0_i32_0 : i32, i32
  }
  func.func @transform_13(%arg0: i32, %arg1: i32) -> (i32, i32, i32) {
    %c0_i32 = arith.constant 0 : i32
    %c0_i32_0 = arith.constant 0 : i32
    return %arg0, %arg1, %c0_i32 : i32, i32, i32
  }
  func.func @transform_14(%arg0: i32, %arg1: i32) -> (i32, i32, i32, i32) {
    %c0_i32 = arith.constant 0 : i32
    %c0_i32_0 = arith.constant 0 : i32
    %c0_i32_1 = arith.constant 0 : i32
    return %arg0, %c0_i32, %arg1, %c0_i32_0 : i32, i32, i32, i32
  }
}

</mosaic_0001>

<llo_original>
// kernel: tpu_custom_call.1
$region0: #{tpu_custom_call.1}
  #allocation0 [shape = 'u32[]', space=smem, size = 0x4, offset = 0x4, fixed_abs, tag = 'smem constant byte address 0x4 - core index']
  #allocation1 [shape = 'u32[144,128]{1,0:T(1,128)}', space=vmem, size = 0x12000, scoped, tag = 'internal scratch']
  %s0 = inlined_call_operand.hbm [shape: f32[2,8,32], index: 0, kind: input, shape index: {}]
  %s1 = inlined_call_operand.hbm [shape: f32[2,8,32], index: 1, kind: input, shape index: {}]
  %s2 = inlined_call_operand.hbm [shape: f32[2,8,8], index: 2, kind: input, shape index: {}]
  %s3 = inlined_call_operand.hbm [shape: f32[32,32], index: 3, kind: input, shape index: {}]
  %s4 = inlined_call_operand.vmem [shape: f32[1,32], index: 4, kind: input, shape index: {}]
  %s5 = inlined_call_operand.hbm [shape: f32[32,32], index: 5, kind: input, shape index: {}]
  %s6 = inlined_call_operand.vmem [shape: f32[1,32], index: 6, kind: input, shape index: {}]
  %s7 = inlined_call_operand.hbm [shape: f32[32,32], index: 7, kind: input, shape index: {}]
  %s8 = inlined_call_operand.vmem [shape: f32[1,32], index: 8, kind: input, shape index: {}]
  %s9 = inlined_call_operand.hbm [shape: f32[32,32], index: 9, kind: input, shape index: {}]
  %s10 = inlined_call_operand.vmem [shape: f32[1,32], index: 10, kind: input, shape index: {}]
  %s11 = inlined_call_operand.vmem [shape: f32[1,32], index: 11, kind: input, shape index: {}]
  %s12 = inlined_call_operand.vmem [shape: f32[1,32], index: 12, kind: input, shape index: {}]
  %s13 = inlined_call_operand.hbm [shape: f32[2,8,32], index: 13, kind: output, shape index: {0}]
  %s14 = inlined_call_operand.hbm [shape: f32[2,4,8,8], index: 14, kind: output, shape index: {1}]
  %15 = xla_tuple %s13, %s14
  %s16 = sld [smem:[#allocation0]]
  $region121: #{tpu_custom_call.1} parent=0
    _
  %s18 = ssub.s32 1, %s16
  %s19 = scalar_select 0, %s18, %s16
  $region1: #{tpu_custom_call.1} parent=0
    #allocation2 [shape = 'u8[8192]{0}', space=vmem, size = 0x2000, scoped, tag = 'input window, operand 0']
    #allocation3 [shape = 's32[2]{0}', space=sflag, size = 0x8, scoped, tag = 'scoped memory for tpu_custom_call.1']
    #allocation4 [shape = 's32[2]{0}', space=sflag, size = 0x8, scoped, tag = 'scoped memory for tpu_custom_call.1']
    #allocation5 [shape = 'u8[8192]{0}', space=vmem, size = 0x2000, scoped, tag = 'input window, operand 1']
    #allocation6 [shape = 's32[2]{0}', space=sflag, size = 0x8, scoped, tag = 'scoped memory for tpu_custom_call.1']
    #allocation7 [shape = 'u8[8192]{0}', space=vmem, size = 0x2000, scoped, tag = 'input window, operand 2']
    #allocation8 [shape = 'u8[16384]{0}', space=vmem, size = 0x4000, scoped, tag = 'input window, operand 3, single buffered']
    #allocation9 [shape = 's32[1]{0}', space=sflag, size = 0x4, scoped, tag = 'scoped memory for tpu_custom_call.1']
    #allocation10 [shape = 'u8[16384]{0}', space=vmem, size = 0x4000, scoped, tag = 'input window, operand 5, single buffered']
    #allocation11 [shape = 'u8[16384]{0}', space=vmem, size = 0x4000, scoped, tag = 'input window, operand 7, single buffered']
    #allocation12 [shape = 's32[1]{0}', space=sflag, size = 0x4, scoped, tag = 'scoped memory for tpu_custom_call.1']
    #allocation13 [shape = 'u8[16384]{0}', space=vmem, size = 0x4000, scoped, tag = 'input window, operand 9, single buffered']
    #allocation14 [shape = 'u8[8192]{0}', space=vmem, size = 0x2000, scoped, tag = 'output window, operand 0']
    #allocation15 [shape = 'u8[32768]{0}', space=vmem, size = 0x8000, scoped, tag = 'output window, operand 1']
    #allocation16 [shape = 's32[2]{0}', space=sflag, size = 0x8, scoped, tag = 'scoped memory for tpu_custom_call.1']
    %20 = vsyncpa [#allocation3], 0
    %s21 = scalar_lea.sflag [#allocation3], 1
    %22 = vsyncpa %s21, 0
    %23 = vsyncpa [#allocation6], 0
    %s24 = scalar_lea.sflag [#allocation6], 1
    %25 = vsyncpa %s24, 0
    %26 = vsyncpa [#allocation9], 0
    %27 = vsyncpa [#allocation12], 0
    %28 = vsyncpa [#allocation4], 0
    %s29 = scalar_lea.sflag [#allocation4], 1
    %30 = vsyncpa %s29, 0
    %31 = vsyncpa [#allocation16], 0
    %s32 = scalar_lea.sflag [#allocation16], 1
    %33 = vsyncpa %s32, 0
    loop: start=0, step=1, limit=4
    $region2: #{tpu_custom_call.1} parent=1 // loop_pre_header
      _
    $region3: #{tpu_custom_call.1} parent=1 // loop_header
      %s35 = sphi 0, %s39
      %p36 = scmp.ge.s32.totalorder %s35, 4
      %s42 = sphi 0, %s54
      %s43 = sphi 0, %s50
      %s44 = sphi 0, %s42
      %s45 = sphi 0, %s43
      %s46 = sphi 0, %s44
      %s47 = sphi 0, %s45
      %s59 = sphi 0, %s61
      %s62 = sphi 0, %s59
      %s63 = sphi 0, %s62
      %s79 = sphi 0, %s63
      %s85 = sphi 0, %s87
      %s88 = sphi 0, %s85
      %s89 = sphi 0, %s88
      %s105 = sphi 0, %s89
      %s113 = sphi 0, %s115
      %s116 = sphi 0, %s113
      %s117 = sphi 0, %s116
      %s133 = sphi 0, %s117
      %s137 = sphi 0, %s137
      %s139 = sphi 0, %s137
      %s140 = sphi 0, %s139
      %s154 = sphi 0, %s140
      %s158 = sphi 0, %s158
      %s160 = sphi 0, %s158
      %s161 = sphi 0, %s160
      %s175 = sphi 0, %s161
      %s179 = sphi 0, %s179
      %s181 = sphi 0, %s179
      %s182 = sphi 0, %s181
      %s196 = sphi 0, %s182
      %s200 = sphi 0, %s200
      %s202 = sphi 0, %s200
      %s203 = sphi 0, %s202
      %s217 = sphi 0, %s203
      %s221 = sphi 0, %s221
      %s223 = sphi 0, %s221
      %s224 = sphi 0, %s223
      %s238 = sphi 0, %s224
      %s242 = sphi 0, %s242
      %s244 = sphi 0, %s242
      %s245 = sphi 0, %s244
      %s259 = sphi 0, %s245
      %s263 = sphi 0, %s263
      %s265 = sphi 0, %s263
      %s266 = sphi 0, %s265
      %s280 = sphi 0, %s266
      %s284 = sphi 0, %s284
      %s286 = sphi 0, %s284
      %s287 = sphi 0, %s286
      %s301 = sphi 0, %s287
      %s305 = sphi 0, %s305
      %s307 = sphi 0, %s305
      %s308 = sphi 0, %s307
      %s322 = sphi 0, %s308
      %s326 = sphi 0, %s326
      %s328 = sphi 0, %s326
      %s329 = sphi 0, %s328
      %s343 = sphi 0, %s329
      %s351 = sphi 0, %s353
      %s354 = sphi 0, %s351
      %s355 = sphi 0, %s354
      %s371 = sphi 0, %s355
      %s379 = sphi 0, %s381
      %s382 = sphi 0, %s379
      %s383 = sphi 0, %s382
      %s399 = sphi 0, %s383
    $region4: #{tpu_custom_call.1} parent=1 // loop_header_branch
      %38 = sbr.rel (%p36) target = $region8
    $region5: #{tpu_custom_call.1} parent=1 // loop_body
      %s40 = ssub.s32 %s35, 1
      %s41 = ssub.s32 %s35, 2
      %s48 = sadd.s32 1, %s43
      %p49 = scmp.ge.s32.totalorder %s48, 1
      %s50 = scalar_select %p49, 0, %s48
      %s51 = sadd.s32 1, %s42
      %s52 = scalar_select %p49, %s51, %s42
      %p53 = scmp.ge.s32.totalorder %s52, 2
      %s54 = scalar_select %p53, 0, %s52
      %s55 = ssub.s32 %s42, %s54
      %s56 = ssub.s32 %s43, %s50
      %s57 = sor.u32 %s55, %s56
      %p58 = scmp.eq.s32.totalorder %s57, 0
      %s60 = sadd.s32 %s59, 1
      %s61 = scalar_select %p58, %s59, %s60
      %p64 = pneg %p58
      %p65 = scmp.eq.s32.totalorder %s35, 1
      %p66 = por %p64, %p65
      %p67 = scmp.ne.s32.totalorder %s59, %s62
      %p68 = scmp.eq.s32.totalorder %s35, 0
      %p69 = por %p67, %p68
      %p70 = scmp.ne.s32.totalorder %s59, %s62
      %p71 = scmp.eq.s32.totalorder %s40, 1
      %p72 = por %p70, %p71
      %p73 = scmp.ne.s32.totalorder %s62, %s63
      %p74 = scmp.eq.s32.totalorder %s40, 0
      %p75 = por %p73, %p74
      %p76 = scmp.ne.s32.totalorder %s62, %s63
      %p77 = scmp.eq.s32.totalorder %s41, 1
      %p78 = por %p76, %p77
      %p80 = scmp.ne.s32.totalorder %s63, %s79
      %p81 = scmp.eq.s32.totalorder %s41, 0
      %p82 = por %p80, %p81
      %s83 = ssub.s32 %s42, %s54
      %p84 = scmp.eq.s32.totalorder %s83, 0
      %s86 = sadd.s32 %s85, 1
      %s87 = scalar_select %p84, %s85, %s86
      %p90 = pneg %p84
      %p91 = scmp.eq.s32.totalorder %s35, 1
      %p92 = por %p90, %p91
      %p93 = scmp.ne.s32.totalorder %s85, %s88
      %p94 = scmp.eq.s32.totalorder %s35, 0
      %p95 = por %p93, %p94
      %p96 = scmp.ne.s32.totalorder %s85, %s88
      %p97 = scmp.eq.s32.totalorder %s40, 1
      %p98 = por %p96, %p97
      %p99 = scmp.ne.s32.totalorder %s88, %s89
      %p100 = scmp.eq.s32.totalorder %s40, 0
      %p101 = por %p99, %p100
      %p102 = scmp.ne.s32.totalorder %s88, %s89
      %p103 = scmp.eq.s32.totalorder %s41, 1
      %p104 = por %p102, %p103
      %p106 = scmp.ne.s32.totalorder %s89, %s105
      %p107 = scmp.eq.s32.totalorder %s41, 0
      %p108 = por %p106, %p107
      %s109 = ssub.s32 %s42, %s54
      %s110 = ssub.s32 %s43, %s50
      %s111 = sor.u32 %s109, %s110
      %p112 = scmp.eq.s32.totalorder %s111, 0
      %s114 = sadd.s32 %s113, 1
      %s115 = scalar_select %p112, %s113, %s114
      %p118 = pneg %p112
      %p119 = scmp.eq.s32.totalorder %s35, 1
      %p120 = por %p118, %p119
      %p121 = scmp.ne.s32.totalorder %s113, %s116
      %p122 = scmp.eq.s32.totalorder %s35, 0
      %p123 = por %p121, %p122
      %p124 = scmp.ne.s32.totalorder %s113, %s116
      %p125 = scmp.eq.s32.totalorder %s40, 1
      %p126 = por %p124, %p125
      %p127 = scmp.ne.s32.totalorder %s116, %s117
      %p128 = scmp.eq.s32.totalorder %s40, 0
      %p129 = por %p127, %p128
      %p130 = scmp.ne.s32.totalorder %s116, %s117
      %p131 = scmp.eq.s32.totalorder %s41, 1
      %p132 = por %p130, %p131
      %p134 = scmp.ne.s32.totalorder %s117, %s133
      %p135 = scmp.eq.s32.totalorder %s41, 0
      %p136 = por %p134, %p135
      %s138 = sadd.s32 %s137, 1
      %p141 = scmp.eq.s32.totalorder %s35, 1
      %p142 = scmp.ne.s32.totalorder %s137, %s139
      %p143 = scmp.eq.s32.totalorder %s35, 0
      %p144 = por %p142, %p143
      %p145 = scmp.ne.s32.totalorder %s137, %s139
      %p146 = scmp.eq.s32.totalorder %s40, 1
      %p147 = por %p145, %p146
      %p148 = scmp.ne.s32.totalorder %s139, %s140
      %p149 = scmp.eq.s32.totalorder %s40, 0
      %p150 = por %p148, %p149
      %p151 = scmp.ne.s32.totalorder %s139, %s140
      %p152 = scmp.eq.s32.totalorder %s41, 1
      %p153 = por %p151, %p152
      %p155 = scmp.ne.s32.totalorder %s140, %s154
      %p156 = scmp.eq.s32.totalorder %s41, 0
      %p157 = por %p155, %p156
      %s159 = sadd.s32 %s158, 1
      %p162 = scmp.eq.s32.totalorder %s35, 1
      %p163 = scmp.ne.s32.totalorder %s158, %s160
      %p164 = scmp.eq.s32.totalorder %s35, 0
      %p165 = por %p163, %p164
      %p166 = scmp.ne.s32.totalorder %s158, %s160
      %p167 = scmp.eq.s32.totalorder %s40, 1
      %p168 = por %p166, %p167
      %p169 = scmp.ne.s32.totalorder %s160, %s161
      %p170 = scmp.eq.s32.totalorder %s40, 0
      %p171 = por %p169, %p170
      %p172 = scmp.ne.s32.totalorder %s160, %s161
      %p173 = scmp.eq.s32.totalorder %s41, 1
      %p174 = por %p172, %p173
      %p176 = scmp.ne.s32.totalorder %s161, %s175
      %p177 = scmp.eq.s32.totalorder %s41, 0
      %p178 = por %p176, %p177
      %s180 = sadd.s32 %s179, 1
      %p183 = scmp.eq.s32.totalorder %s35, 1
      %p184 = scmp.ne.s32.totalorder %s179, %s181
      %p185 = scmp.eq.s32.totalorder %s35, 0
      %p186 = por %p184, %p185
      %p187 = scmp.ne.s32.totalorder %s179, %s181
      %p188 = scmp.eq.s32.totalorder %s40, 1
      %p189 = por %p187, %p188
      %p190 = scmp.ne.s32.totalorder %s181, %s182
      %p191 = scmp.eq.s32.totalorder %s40, 0
      %p192 = por %p190, %p191
      %p193 = scmp.ne.s32.totalorder %s181, %s182
      %p194 = scmp.eq.s32.totalorder %s41, 1
      %p195 = por %p193, %p194
      %p197 = scmp.ne.s32.totalorder %s182, %s196
      %p198 = scmp.eq.s32.totalorder %s41, 0
      %p199 = por %p197, %p198
      %s201 = sadd.s32 %s200, 1
      %p204 = scmp.eq.s32.totalorder %s35, 1
      %p205 = scmp.ne.s32.totalorder %s200, %s202
      %p206 = scmp.eq.s32.totalorder %s35, 0
      %p207 = por %p205, %p206
      %p208 = scmp.ne.s32.totalorder %s200, %s202
      %p209 = scmp.eq.s32.totalorder %s40, 1
      %p210 = por %p208, %p209
      %p211 = scmp.ne.s32.totalorder %s202, %s203
      %p212 = scmp.eq.s32.totalorder %s40, 0
      %p213 = por %p211, %p212
      %p214 = scmp.ne.s32.totalorder %s202, %s203
      %p215 = scmp.eq.s32.totalorder %s41, 1
      %p216 = por %p214, %p215
      %p218 = scmp.ne.s32.totalorder %s203, %s217
      %p219 = scmp.eq.s32.totalorder %s41, 0
      %p220 = por %p218, %p219
      %s222 = sadd.s32 %s221, 1
      %p225 = scmp.eq.s32.totalorder %s35, 1
      %p226 = scmp.ne.s32.totalorder %s221, %s223
      %p227 = scmp.eq.s32.totalorder %s35, 0
      %p228 = por %p226, %p227
      %p229 = scmp.ne.s32.totalorder %s221, %s223
      %p230 = scmp.eq.s32.totalorder %s40, 1
      %p231 = por %p229, %p230
      %p232 = scmp.ne.s32.totalorder %s223, %s224
      %p233 = scmp.eq.s32.totalorder %s40, 0
      %p234 = por %p232, %p233
      %p235 = scmp.ne.s32.totalorder %s223, %s224
      %p236 = scmp.eq.s32.totalorder %s41, 1
      %p237 = por %p235, %p236
      %p239 = scmp.ne.s32.totalorder %s224, %s238
      %p240 = scmp.eq.s32.totalorder %s41, 0
      %p241 = por %p239, %p240
      %s243 = sadd.s32 %s242, 1
      %p246 = scmp.eq.s32.totalorder %s35, 1
      %p247 = scmp.ne.s32.totalorder %s242, %s244
      %p248 = scmp.eq.s32.totalorder %s35, 0
      %p249 = por %p247, %p248
      %p250 = scmp.ne.s32.totalorder %s242, %s244
      %p251 = scmp.eq.s32.totalorder %s40, 1
      %p252 = por %p250, %p251
      %p253 = scmp.ne.s32.totalorder %s244, %s245
      %p254 = scmp.eq.s32.totalorder %s40, 0
      %p255 = por %p253, %p254
      %p256 = scmp.ne.s32.totalorder %s244, %s245
      %p257 = scmp.eq.s32.totalorder %s41, 1
      %p258 = por %p256, %p257
      %p260 = scmp.ne.s32.totalorder %s245, %s259
      %p261 = scmp.eq.s32.totalorder %s41, 0
      %p262 = por %p260, %p261
      %s264 = sadd.s32 %s263, 1
      %p267 = scmp.eq.s32.totalorder %s35, 1
      %p268 = scmp.ne.s32.totalorder %s263, %s265
      %p269 = scmp.eq.s32.totalorder %s35, 0
      %p270 = por %p268, %p269
      %p271 = scmp.ne.s32.totalorder %s263, %s265
      %p272 = scmp.eq.s32.totalorder %s40, 1
      %p273 = por %p271, %p272
      %p274 = scmp.ne.s32.totalorder %s265, %s266
      %p275 = scmp.eq.s32.totalorder %s40, 0
      %p276 = por %p274, %p275
      %p277 = scmp.ne.s32.totalorder %s265, %s266
      %p278 = scmp.eq.s32.totalorder %s41, 1
      %p279 = por %p277, %p278
      %p281 = scmp.ne.s32.totalorder %s266, %s280
      %p282 = scmp.eq.s32.totalorder %s41, 0
      %p283 = por %p281, %p282
      %s285 = sadd.s32 %s284, 1
      %p288 = scmp.eq.s32.totalorder %s35, 1
      %p289 = scmp.ne.s32.totalorder %s284, %s286
      %p290 = scmp.eq.s32.totalorder %s35, 0
      %p291 = por %p289, %p290
      %p292 = scmp.ne.s32.totalorder %s284, %s286
      %p293 = scmp.eq.s32.totalorder %s40, 1
      %p294 = por %p292, %p293
      %p295 = scmp.ne.s32.totalorder %s286, %s287
      %p296 = scmp.eq.s32.totalorder %s40, 0
      %p297 = por %p295, %p296
      %p298 = scmp.ne.s32.totalorder %s286, %s287
      %p299 = scmp.eq.s32.totalorder %s41, 1
      %p300 = por %p298, %p299
      %p302 = scmp.ne.s32.totalorder %s287, %s301
      %p303 = scmp.eq.s32.totalorder %s41, 0
      %p304 = por %p302, %p303
      %s306 = sadd.s32 %s305, 1
      %p309 = scmp.eq.s32.totalorder %s35, 1
      %p310 = scmp.ne.s32.totalorder %s305, %s307
      %p311 = scmp.eq.s32.totalorder %s35, 0
      %p312 = por %p310, %p311
      %p313 = scmp.ne.s32.totalorder %s305, %s307
      %p314 = scmp.eq.s32.totalorder %s40, 1
      %p315 = por %p313, %p314
      %p316 = scmp.ne.s32.totalorder %s307, %s308
      %p317 = scmp.eq.s32.totalorder %s40, 0
      %p318 = por %p316, %p317
      %p319 = scmp.ne.s32.totalorder %s307, %s308
      %p320 = scmp.eq.s32.totalorder %s41, 1
      %p321 = por %p319, %p320
      %p323 = scmp.ne.s32.totalorder %s308, %s322
      %p324 = scmp.eq.s32.totalorder %s41, 0
      %p325 = por %p323, %p324
      %s327 = sadd.s32 %s326, 1
      %p330 = scmp.eq.s32.totalorder %s35, 1
      %p331 = scmp.ne.s32.totalorder %s326, %s328
      %p332 = scmp.eq.s32.totalorder %s35, 0
      %p333 = por %p331, %p332
      %p334 = scmp.ne.s32.totalorder %s326, %s328
      %p335 = scmp.eq.s32.totalorder %s40, 1
      %p336 = por %p334, %p335
      %p337 = scmp.ne.s32.totalorder %s328, %s329
      %p338 = scmp.eq.s32.totalorder %s40, 0
      %p339 = por %p337, %p338
      %p340 = scmp.ne.s32.totalorder %s328, %s329
      %p341 = scmp.eq.s32.totalorder %s41, 1
      %p342 = por %p340, %p341
      %p344 = scmp.ne.s32.totalorder %s329, %s343
      %p345 = scmp.eq.s32.totalorder %s41, 0
      %p346 = por %p344, %p345
      %s347 = ssub.s32 %s42, %s54
      %s348 = ssub.s32 %s43, %s50
      %s349 = sor.u32 %s347, %s348
      %p350 = scmp.eq.s32.totalorder %s349, 0
      %s352 = sadd.s32 %s351, 1
      %s353 = scalar_select %p350, %s351, %s352
      %p356 = pneg %p350
      %p357 = scmp.eq.s32.totalorder %s35, 1
      %p358 = por %p356, %p357
      %p359 = scmp.ne.s32.totalorder %s351, %s354
      %p360 = scmp.eq.s32.totalorder %s35, 0
      %p361 = por %p359, %p360
      %p362 = scmp.ne.s32.totalorder %s351, %s354
      %p363 = scmp.eq.s32.totalorder %s40, 1
      %p364 = por %p362, %p363
      %p365 = scmp.ne.s32.totalorder %s354, %s355
      %p366 = scmp.eq.s32.totalorder %s40, 0
      %p367 = por %p365, %p366
      %p368 = scmp.ne.s32.totalorder %s354, %s355
      %p369 = scmp.eq.s32.totalorder %s41, 1
      %p370 = por %p368, %p369
      %p372 = scmp.ne.s32.totalorder %s355, %s371
      %p373 = scmp.eq.s32.totalorder %s41, 0
      %p374 = por %p372, %p373
      %s375 = ssub.s32 %s42, %s54
      %s376 = ssub.s32 %s43, %s50
      %s377 = sor.u32 %s375, %s376
      %p378 = scmp.eq.s32.totalorder %s377, 0
      %s380 = sadd.s32 %s379, 1
      %s381 = scalar_select %p378, %s379, %s380
      %p384 = pneg %p378
      %p385 = scmp.eq.s32.totalorder %s35, 1
      %p386 = por %p384, %p385
      %p387 = scmp.ne.s32.totalorder %s379, %s382
      %p388 = scmp.eq.s32.totalorder %s35, 0
      %p389 = por %p387, %p388
      %p390 = scmp.ne.s32.totalorder %s379, %s382
      %p391 = scmp.eq.s32.totalorder %s40, 1
      %p392 = por %p390, %p391
      %p393 = scmp.ne.s32.totalorder %s382, %s383
      %p394 = scmp.eq.s32.totalorder %s40, 0
      %p395 = por %p393, %p394
      %p396 = scmp.ne.s32.totalorder %s382, %s383
      %p397 = scmp.eq.s32.totalorder %s41, 1
      %p398 = por %p396, %p397
      %p400 = scmp.ne.s32.totalorder %s383, %s399
      %p401 = scmp.eq.s32.totalorder %s41, 0
      %p402 = por %p400, %p401
      %p403 = scmp.le.s32.totalorder 1, %s35
      %p404 = scmp.lt.s32.totalorder %s35, 3
      %p405 = pnand %p403, %p404
      %p406 = pneg %p405
      // Predicated region
      $region9: #{tpu_custom_call.1} parent=5 // pred_check
        _
      $region10: #{tpu_custom_call.1} parent=5 // pred_check_branch
        %408 = sbr.rel (%p405) target = $region12
      $region11: #{tpu_custom_call.1} parent=5 // pred_region
        %s409 = ssub.s32 %s35, 1
        // Predicated region
        $region13: #{tpu_custom_call.1} parent=11 // pred_check
          %p410 = pneg %p150
        $region14: #{tpu_custom_call.1} parent=11 // pred_check_branch
          %412 = sbr.rel (%p410) target = $region16
        $region15: #{tpu_custom_call.1} parent=11 // pred_region
          %s414 = ssub.s32 512, 512
          %415 = vsyncadd [#allocation9], %s414
          %s416 = sshll.u32 [#allocation8], 4
          %s417 = int_to_ptr.vmem [resolvable:$true] %s416
          %422 = dma.hbm_to_vmem [thread:$0]  %s3, 512, %s417, [#allocation9], 128, 128, 8
        $region16: #{tpu_custom_call.1} parent=11 // pred_fallthru
          _
        // Predicated region
        $region17: #{tpu_custom_call.1} parent=11 // pred_check
          %p423 = pneg %p171
        $region18: #{tpu_custom_call.1} parent=11 // pred_check_branch
          %425 = sbr.rel (%p423) target = $region20
        $region19: #{tpu_custom_call.1} parent=11 // pred_region
          _
        $region20: #{tpu_custom_call.1} parent=11 // pred_fallthru
          _
        // Predicated region
        $region21: #{tpu_custom_call.1} parent=11 // pred_check
          %p426 = pneg %p192
        $region22: #{tpu_custom_call.1} parent=11 // pred_check_branch
          %428 = sbr.rel (%p426) target = $region24
        $region23: #{tpu_custom_call.1} parent=11 // pred_region
          %s430 = ssub.s32 512, 512
          %431 = vsyncadd [#allocation9], %s430
          %s432 = sshll.u32 [#allocation10], 4
          %s433 = int_to_ptr.vmem [resolvable:$true] %s432
          %438 = dma.hbm_to_vmem [thread:$0]  %s5, 512, %s433, [#allocation9], 128, 128, 8
        $region24: #{tpu_custom_call.1} parent=11 // pred_fallthru
          _
        // Predicated region
        $region25: #{tpu_custom_call.1} parent=11 // pred_check
          %p439 = pneg %p213
        $region26: #{tpu_custom_call.1} parent=11 // pred_check_branch
          %441 = sbr.rel (%p439) target = $region28
        $region27: #{tpu_custom_call.1} parent=11 // pred_region
          _
        $region28: #{tpu_custom_call.1} parent=11 // pred_fallthru
          _
        // Predicated region
        $region29: #{tpu_custom_call.1} parent=11 // pred_check
          %p442 = pneg %p234
        $region30: #{tpu_custom_call.1} parent=11 // pred_check_branch
          %444 = sbr.rel (%p442) target = $region32
        $region31: #{tpu_custom_call.1} parent=11 // pred_region
          %s446 = ssub.s32 512, 512
          %447 = vsyncadd [#allocation12], %s446
          %s448 = sshll.u32 [#allocation11], 4
          %s449 = int_to_ptr.vmem [resolvable:$true] %s448
          %454 = dma.hbm_to_vmem [thread:$0]  %s7, 512, %s449, [#allocation12], 128, 128, 8
        $region32: #{tpu_custom_call.1} parent=11 // pred_fallthru
          _
        // Predicated region
        $region33: #{tpu_custom_call.1} parent=11 // pred_check
          %p455 = pneg %p255
        $region34: #{tpu_custom_call.1} parent=11 // pred_check_branch
          %457 = sbr.rel (%p455) target = $region36
        $region35: #{tpu_custom_call.1} parent=11 // pred_region
          _
        $region36: #{tpu_custom_call.1} parent=11 // pred_fallthru
          _
        // Predicated region
        $region37: #{tpu_custom_call.1} parent=11 // pred_check
          %p458 = pneg %p276
        $region38: #{tpu_custom_call.1} parent=11 // pred_check_branch
          %460 = sbr.rel (%p458) target = $region40
        $region39: #{tpu_custom_call.1} parent=11 // pred_region
          %s462 = ssub.s32 512, 512
          %463 = vsyncadd [#allocation12], %s462
          %s464 = sshll.u32 [#allocation13], 4
          %s465 = int_to_ptr.vmem [resolvable:$true] %s464
          %470 = dma.hbm_to_vmem [thread:$0]  %s9, 512, %s465, [#allocation12], 128, 128, 8
        $region40: #{tpu_custom_call.1} parent=11 // pred_fallthru
          _
        // Predicated region
        $region41: #{tpu_custom_call.1} parent=11 // pred_check
          %p471 = pneg %p297
        $region42: #{tpu_custom_call.1} parent=11 // pred_check_branch
          %473 = sbr.rel (%p471) target = $region44
        $region43: #{tpu_custom_call.1} parent=11 // pred_region
          _
        $region44: #{tpu_custom_call.1} parent=11 // pred_fallthru
          _
        // Predicated region
        $region45: #{tpu_custom_call.1} parent=11 // pred_check
          %p474 = pneg %p318
        $region46: #{tpu_custom_call.1} parent=11 // pred_check_branch
          %476 = sbr.rel (%p474) target = $region48
        $region47: #{tpu_custom_call.1} parent=11 // pred_region
          _
        $region48: #{tpu_custom_call.1} parent=11 // pred_fallthru
          _
        // Predicated region
        $region49: #{tpu_custom_call.1} parent=11 // pred_check
          %p477 = pneg %p339
        $region50: #{tpu_custom_call.1} parent=11 // pred_check_branch
          %479 = sbr.rel (%p477) target = $region52
        $region51: #{tpu_custom_call.1} parent=11 // pred_region
          _
        $region52: #{tpu_custom_call.1} parent=11 // pred_fallthru
          _
      $region12: #{tpu_custom_call.1} parent=5 // pred_fallthru
        _
      %p480 = scmp.lt.s32.totalorder %s35, 2
      // Predicated region
      $region53: #{tpu_custom_call.1} parent=5 // pred_check
        %p481 = pneg %p480
      $region54: #{tpu_custom_call.1} parent=5 // pred_check_branch
        %483 = sbr.rel (%p481) target = $region56
      $region55: #{tpu_custom_call.1} parent=5 // pred_region
        // Predicated region
        $region57: #{tpu_custom_call.1} parent=55 // pred_check
          %p484 = pneg %p69
        $region58: #{tpu_custom_call.1} parent=55 // pred_check_branch
          %486 = sbr.rel (%p484) target = $region60
        $region59: #{tpu_custom_call.1} parent=55 // pred_region
          %s487 = sand.u32 %s59, 1
          %s488 = scalar_lea.sflag [#allocation3], %s487
          %s489 = sand.u32 %s59, 1
          %s490 = smul.addr %s489, 8
          %s491 = scalar_lea.vmem [#allocation2], %s490
          %s493 = ssub.s32 128, 128
          %494 = vsyncadd %s488, %s493
          %s495 = sadd.s32 %s43, %s42
          %s496 = smul.addr %s495, 128
          %s497 = scalar_lea.hbm %s0, %s496
          %s499 = sshll.u32 %s491, 4
          %s500 = int_to_ptr.vmem [resolvable:$true] %s499
          %502 = dma.hbm_to_vmem [thread:$0]  %s497, 128, %s500, %s488
        $region60: #{tpu_custom_call.1} parent=55 // pred_fallthru
          _
        // Predicated region
        $region61: #{tpu_custom_call.1} parent=55 // pred_check
          %p503 = pneg %p95
        $region62: #{tpu_custom_call.1} parent=55 // pred_check_branch
          %505 = sbr.rel (%p503) target = $region64
        $region63: #{tpu_custom_call.1} parent=55 // pred_region
          %s506 = sand.u32 %s35, 1
          %s507 = scalar_lea.sflag [#allocation6], %s506
          %s508 = sand.u32 %s85, 1
          %s509 = smul.addr %s508, 8
          %s510 = scalar_lea.vmem [#allocation5], %s509
          %s512 = ssub.s32 128, 128
          %513 = vsyncadd %s507, %s512
          %s514 = smul.addr %s42, 128
          %s515 = scalar_lea.hbm %s1, %s514
          %s517 = sshll.u32 %s510, 4
          %s518 = int_to_ptr.vmem [resolvable:$true] %s517
          %520 = dma.hbm_to_vmem [thread:$0]  %s515, 128, %s518, %s507
        $region64: #{tpu_custom_call.1} parent=55 // pred_fallthru
          _
        // Predicated region
        $region65: #{tpu_custom_call.1} parent=55 // pred_check
          %p521 = pneg %p123
        $region66: #{tpu_custom_call.1} parent=55 // pred_check_branch
          %523 = sbr.rel (%p521) target = $region68
        $region67: #{tpu_custom_call.1} parent=55 // pred_region
          %s524 = sand.u32 %s35, 1
          %s525 = scalar_lea.sflag [#allocation6], %s524
          %s526 = sand.u32 %s113, 1
          %s527 = smul.addr %s526, 8
          %s528 = scalar_lea.vmem [#allocation7], %s527
          %s530 = ssub.s32 128, 128
          %531 = vsyncadd %s525, %s530
          %s532 = sadd.s32 %s43, %s42
          %s533 = smul.addr %s532, 128
          %s534 = scalar_lea.hbm %s2, %s533
          %s536 = sshll.u32 %s528, 4
          %s537 = int_to_ptr.vmem [resolvable:$true] %s536
          %539 = dma.hbm_to_vmem [thread:$0]  %s534, 128, %s537, %s525
        $region68: #{tpu_custom_call.1} parent=55 // pred_fallthru
          _
      $region56: #{tpu_custom_call.1} parent=5 // pred_fallthru
        _
      %p540 = scmp.le.s32.totalorder 1, %s35
      %p541 = scmp.lt.s32.totalorder %s35, 3
      %p542 = pnand %p540, %p541
      %p543 = pneg %p542
      // Predicated region
      $region69: #{tpu_custom_call.1} parent=5 // pred_check
        _
      $region70: #{tpu_custom_call.1} parent=5 // pred_check_branch
        %545 = sbr.rel (%p542) target = $region72
      $region71: #{tpu_custom_call.1} parent=5 // pred_region
        %s546 = ssub.s32 %s35, 1
        %s547 = sand.u32 %s62, 1
        %s548 = scalar_lea.sflag [#allocation3], %s547
        %s549 = sand.u32 %s62, 1
        %s550 = smul.addr %s549, 8
        %s551 = scalar_lea.vmem [#allocation2], %s550
        // Predicated region
        $region73: #{tpu_custom_call.1} parent=71 // pred_check
          %p552 = pneg %p75
        $region74: #{tpu_custom_call.1} parent=71 // pred_check_branch
          %554 = sbr.rel (%p552) target = $region76
        $region75: #{tpu_custom_call.1} parent=71 // pred_region
          %555 = dma.done %s548, 128
        $region76: #{tpu_custom_call.1} parent=71 // pred_fallthru
          _
        %s556 = sand.u32 %s40, 1
        %s557 = scalar_lea.sflag [#allocation6], %s556
        %s558 = sand.u32 %s88, 1
        %s559 = smul.addr %s558, 8
        %s560 = scalar_lea.vmem [#allocation5], %s559
        // Predicated region
        $region77: #{tpu_custom_call.1} parent=71 // pred_check
          %p561 = pneg %p101
        $region78: #{tpu_custom_call.1} parent=71 // pred_check_branch
          %563 = sbr.rel (%p561) target = $region80
        $region79: #{tpu_custom_call.1} parent=71 // pred_region
          %564 = dma.done %s557, 128
        $region80: #{tpu_custom_call.1} parent=71 // pred_fallthru
          _
        %s565 = sand.u32 %s40, 1
        %s566 = scalar_lea.sflag [#allocation6], %s565
        %s567 = sand.u32 %s116, 1
        %s568 = smul.addr %s567, 8
        %s569 = scalar_lea.vmem [#allocation7], %s568
        // Predicated region
        $region81: #{tpu_custom_call.1} parent=71 // pred_check
          %p570 = pneg %p129
        $region82: #{tpu_custom_call.1} parent=71 // pred_check_branch
          %572 = sbr.rel (%p570) target = $region84
        $region83: #{tpu_custom_call.1} parent=71 // pred_region
          %573 = dma.done %s566, 128
        $region84: #{tpu_custom_call.1} parent=71 // pred_fallthru
          _
        // Predicated region
        $region85: #{tpu_custom_call.1} parent=71 // pred_check
          %p574 = pneg %p150
        $region86: #{tpu_custom_call.1} parent=71 // pred_check_branch
          %576 = sbr.rel (%p574) target = $region88
        $region87: #{tpu_custom_call.1} parent=71 // pred_region
          %577 = dma.done [#allocation9], 512
        $region88: #{tpu_custom_call.1} parent=71 // pred_fallthru
          _
        // Predicated region
        $region89: #{tpu_custom_call.1} parent=71 // pred_check
          %p578 = pneg %p192
        $region90: #{tpu_custom_call.1} parent=71 // pred_check_branch
          %580 = sbr.rel (%p578) target = $region92
        $region91: #{tpu_custom_call.1} parent=71 // pred_region
          %581 = dma.done [#allocation9], 512
        $region92: #{tpu_custom_call.1} parent=71 // pred_fallthru
          _
        // Predicated region
        $region93: #{tpu_custom_call.1} parent=71 // pred_check
          %p582 = pneg %p234
        $region94: #{tpu_custom_call.1} parent=71 // pred_check_branch
          %584 = sbr.rel (%p582) target = $region96
        $region95: #{tpu_custom_call.1} parent=71 // pred_region
          %585 = dma.done [#allocation12], 512
        $region96: #{tpu_custom_call.1} parent=71 // pred_fallthru
          _
        // Predicated region
        $region97: #{tpu_custom_call.1} parent=71 // pred_check
          %p586 = pneg %p276
        $region98: #{tpu_custom_call.1} parent=71 // pred_check_branch
          %588 = sbr.rel (%p586) target = $region100
        $region99: #{tpu_custom_call.1} parent=71 // pred_region
          %589 = dma.done [#allocation12], 512
        $region100: #{tpu_custom_call.1} parent=71 // pred_fallthru
          _
        %s590 = sand.u32 %s62, 1
        %s591 = scalar_lea.sflag [#allocation3], %s590
        %s592 = sand.u32 %s62, 1
        %s593 = smul.addr %s592, 8
        %s594 = scalar_lea.vmem [#allocation2], %s593
        %p595 = pneg %p75
        %p596 = pneg %p72
        %s597 = sand.u32 %s40, 1
        %s598 = scalar_lea.sflag [#allocation6], %s597
        %s599 = sand.u32 %s88, 1
        %s600 = smul.addr %s599, 8
        %s601 = scalar_lea.vmem [#allocation5], %s600
        %p602 = pneg %p101
        %p603 = pneg %p98
        %s604 = sand.u32 %s40, 1
        %s605 = scalar_lea.sflag [#allocation6], %s604
        %s606 = sand.u32 %s116, 1
        %s607 = smul.addr %s606, 8
        %s608 = scalar_lea.vmem [#allocation7], %s607
        %p609 = pneg %p129
        %p610 = pneg %p126
        %p611 = pneg %p150
        %p612 = pneg %p147
        %p613 = pneg %p171
        %p614 = pneg %p168
        %p615 = pneg %p192
        %p616 = pneg %p189
        %p617 = pneg %p213
        %p618 = pneg %p210
        %p619 = pneg %p234
        %p620 = pneg %p231
        %p621 = pneg %p255
        %p622 = pneg %p252
        %p623 = pneg %p276
        %p624 = pneg %p273
        %p625 = pneg %p297
        %p626 = pneg %p294
        %p627 = pneg %p318
        %p628 = pneg %p315
        %p629 = pneg %p339
        %p630 = pneg %p336
        %p631 = pneg %p367
        %p632 = pneg %p364
        %s633 = sand.u32 %s354, 1
        %s634 = scalar_lea.sflag [#allocation4], %s633
        %s635 = sand.u32 %s354, 1
        %s636 = smul.addr %s635, 8
        %s637 = scalar_lea.vmem [#allocation14], %s636
        %p638 = pneg %p395
        %p639 = pneg %p392
        %s640 = sand.u32 %s382, 1
        %s641 = scalar_lea.sflag [#allocation16], %s640
        %s642 = sand.u32 %s382, 1
        %s643 = smul.addr %s642, 32
        %s644 = scalar_lea.vmem [#allocation15], %s643
        %v645 = vld [vmem:[%s551] sm:$0xff]
        %v646 = vld [vmem:[%s560] sm:$0xff]
        %v647 = vld [vmem:[%s569] sm:$0xff]
        %vm648 = vcmp.eq.f32.partialorder %v647, 0.0
        %v649 = vld [vmem:[#allocation8] sm:$0xff]
        %v650 = vld [vmem:[#allocation8 + $0x8] sm:$0xff]
        %v651 = vld [vmem:[#allocation8 + $0x10] sm:$0xff]
        %v652 = vld [vmem:[#allocation8 + $0x18] sm:$0xff]
        %v653 = vld [vmem:[%s4] sm:$0x1]
        %v655 = vlaneseq
        %v656 = vshrl.u32 %v655, 7
        %v657 = vsub.s32 0, %v656
        %v658 = vrot.slane %v653, %v657
        %vm660 = vcmask 261120
        %v662 = vsel %vm660, %v645, 0
        %664 = vmatprep.subr.mxu0 0.0
        %665 = vmatpush1.msra.mxu0 0.0
        %666 = vmatprep.subr.mxu0 0.0
        %667 = vmatpush1.msra.mxu0 0.0
        %668 = vmatprep.subr.mxu0 0.0
        %669 = vmatpush1.msra.mxu0 0.0
        %670 = vmatprep.subr.mxu0 0.0
        %671 = vmatpush1.msra.mxu0 0.0
        %672 = vmatprep.subr.mxu0 0.0
        %673 = vmatpush1.msra.mxu0 0.0
        %674 = vmatprep.subr.mxu0 0.0
        %675 = vmatpush1.msra.mxu0 0.0
        %676 = vmatprep.subr.mxu0 0.0
        %677 = vmatpush1.msra.mxu0 0.0
        %678 = vmatprep.subr.mxu0 0.0
        %679 = vmatpush1.msra.mxu0 0.0
        %680 = vmatprep.subr.mxu0 0.0
        %681 = vmatpush1.msra.mxu0 0.0
        %682 = vmatprep.subr.mxu0 0.0
        %683 = vmatpush1.msra.mxu0 0.0
        %684 = vmatprep.subr.mxu0 0.0
        %685 = vmatpush1.msra.mxu0 0.0
        %686 = vmatprep.subr.mxu0 0.0
        %687 = vmatpush1.msra.mxu0 0.0
        %688 = vmatprep.subr.mxu0 0.0
        %689 = vmatpush1.msra.mxu0 %v652
        %690 = vmatprep.subr.mxu0 0.0
        %691 = vmatpush1.msra.mxu0 %v651
        %692 = vmatprep.subr.mxu0 0.0
        %693 = vmatpush1.msra.mxu0 %v650
        %694 = vmatprep.subr.mxu0 0.0
        %695 = vmatpush1.msra.mxu0 %v649
        %696 = vmatprep.subr.mxu0 0.0
        %697 = vmatpush2.msra.mxu0 0.0
        %698 = vmatprep.subr.mxu0 0.0
        %699 = vmatpush2.msra.mxu0 0.0
        %700 = vmatprep.subr.mxu0 0.0
        %701 = vmatpush2.msra.mxu0 0.0
        %702 = vmatprep.subr.mxu0 0.0
        %703 = vmatpush2.msra.mxu0 0.0
        %704 = vmatprep.subr.mxu0 0.0
        %705 = vmatpush2.msra.mxu0 0.0
        %706 = vmatprep.subr.mxu0 0.0
        %707 = vmatpush2.msra.mxu0 0.0
        %708 = vmatprep.subr.mxu0 0.0
        %709 = vmatpush2.msra.mxu0 0.0
        %710 = vmatprep.subr.mxu0 0.0
        %711 = vmatpush2.msra.mxu0 0.0
        %712 = vmatprep.subr.mxu0 0.0
        %713 = vmatpush2.msra.mxu0 0.0
        %714 = vmatprep.subr.mxu0 0.0
        %715 = vmatpush2.msra.mxu0 0.0
        %716 = vmatprep.subr.mxu0 0.0
        %717 = vmatpush2.msra.mxu0 0.0
        %718 = vmatprep.subr.mxu0 0.0
        %719 = vmatpush2.msra.mxu0 0.0
        %720 = vmatprep.subr.mxu0 0.0
        %721 = vmatpush2.msra.mxu0 0.0
        %722 = vmatprep.subr.mxu0 0.0
        %723 = vmatpush2.msra.mxu0 0.0
        %724 = vmatprep.subr.mxu0 0.0
        %725 = vmatpush2.msra.mxu0 0.0
        %726 = vmatprep.subr.mxu0 0.0
        %727 = vmatpush2.msra.mxu0 0.0
        %728 = vmatprep.mubr.f32.mxu0 0.0
        %729 = vmatmul.mubr.f32.gmra.mxu0 %v662
        %v730 = vpop.f32.mrf.mxu0
        %v731 = vadd.f32 %v658, %v730
        %v732 = vpop.f32.mrf.mxu0
        %733 = vdwg.mxu0
        %v734 = vld [vmem:[#allocation10] sm:$0xff]
        %v735 = vld [vmem:[#allocation10 + $0x8] sm:$0xff]
        %v736 = vld [vmem:[#allocation10 + $0x10] sm:$0xff]
        %v737 = vld [vmem:[#allocation10 + $0x18] sm:$0xff]
        %v738 = vld [vmem:[%s6] sm:$0x1]
        %v740 = vlaneseq
        %v741 = vshrl.u32 %v740, 7
        %v742 = vsub.s32 0, %v741
        %v743 = vrot.slane %v738, %v742
        %v746 = vsel %vm660, %v646, 0
        %748 = vmatprep.subr.mxu0 0.0
        %749 = vmatpush1.msra.mxu0 0.0
        %750 = vmatprep.subr.mxu0 0.0
        %751 = vmatpush1.msra.mxu0 0.0
        %752 = vmatprep.subr.mxu0 0.0
        %753 = vmatpush1.msra.mxu0 0.0
        %754 = vmatprep.subr.mxu0 0.0
        %755 = vmatpush1.msra.mxu0 0.0
        %756 = vmatprep.subr.mxu0 0.0
        %757 = vmatpush1.msra.mxu0 0.0
        %758 = vmatprep.subr.mxu0 0.0
        %759 = vmatpush1.msra.mxu0 0.0
        %760 = vmatprep.subr.mxu0 0.0
        %761 = vmatpush1.msra.mxu0 0.0
        %762 = vmatprep.subr.mxu0 0.0
        %763 = vmatpush1.msra.mxu0 0.0
        %764 = vmatprep.subr.mxu0 0.0
        %765 = vmatpush1.msra.mxu0 0.0
        %766 = vmatprep.subr.mxu0 0.0
        %767 = vmatpush1.msra.mxu0 0.0
        %768 = vmatprep.subr.mxu0 0.0
        %769 = vmatpush1.msra.mxu0 0.0
        %770 = vmatprep.subr.mxu0 0.0
        %771 = vmatpush1.msra.mxu0 0.0
        %772 = vmatprep.subr.mxu0 0.0
        %773 = vmatpush1.msra.mxu0 %v737
        %774 = vmatprep.subr.mxu0 0.0
        %775 = vmatpush1.msra.mxu0 %v736
        %776 = vmatprep.subr.mxu0 0.0
        %777 = vmatpush1.msra.mxu0 %v735
        %778 = vmatprep.subr.mxu0 0.0
        %779 = vmatpush1.msra.mxu0 %v734
        %780 = vmatprep.subr.mxu0 0.0
        %781 = vmatpush2.msra.mxu0 0.0
        %782 = vmatprep.subr.mxu0 0.0
        %783 = vmatpush2.msra.mxu0 0.0
        %784 = vmatprep.subr.mxu0 0.0
        %785 = vmatpush2.msra.mxu0 0.0
        %786 = vmatprep.subr.mxu0 0.0
        %787 = vmatpush2.msra.mxu0 0.0
        %788 = vmatprep.subr.mxu0 0.0
        %789 = vmatpush2.msra.mxu0 0.0
        %790 = vmatprep.subr.mxu0 0.0
        %791 = vmatpush2.msra.mxu0 0.0
        %792 = vmatprep.subr.mxu0 0.0
        %793 = vmatpush2.msra.mxu0 0.0
        %794 = vmatprep.subr.mxu0 0.0
        %795 = vmatpush2.msra.mxu0 0.0
        %796 = vmatprep.subr.mxu0 0.0
        %797 = vmatpush2.msra.mxu0 0.0
        %798 = vmatprep.subr.mxu0 0.0
        %799 = vmatpush2.msra.mxu0 0.0
        %800 = vmatprep.subr.mxu0 0.0
        %801 = vmatpush2.msra.mxu0 0.0
        %802 = vmatprep.subr.mxu0 0.0
        %803 = vmatpush2.msra.mxu0 0.0
        %804 = vmatprep.subr.mxu0 0.0
        %805 = vmatpush2.msra.mxu0 0.0
        %806 = vmatprep.subr.mxu0 0.0
        %807 = vmatpush2.msra.mxu0 0.0
        %808 = vmatprep.subr.mxu0 0.0
        %809 = vmatpush2.msra.mxu0 0.0
        %810 = vmatprep.subr.mxu0 0.0
        %811 = vmatpush2.msra.mxu0 0.0
        %812 = vmatprep.mubr.f32.mxu0 0.0
        %813 = vmatmul.mubr.f32.gmra.mxu0 %v746
        %v814 = vpop.f32.mrf.mxu0
        %v815 = vadd.f32 %v743, %v814
        %v816 = vpop.f32.mrf.mxu0
        %817 = vdwg.mxu0
        %v818 = vld [vmem:[#allocation11] sm:$0xff]
        %v819 = vld [vmem:[#allocation11 + $0x8] sm:$0xff]
        %v820 = vld [vmem:[#allocation11 + $0x10] sm:$0xff]
        %v821 = vld [vmem:[#allocation11 + $0x18] sm:$0xff]
        %v822 = vld [vmem:[%s8] sm:$0x1]
        %v824 = vlaneseq
        %v825 = vshrl.u32 %v824, 7
        %v826 = vsub.s32 0, %v825
        %v827 = vrot.slane %v822, %v826
        %829 = vmatprep.subr.mxu0 0.0
        %830 = vmatpush1.msra.mxu0 0.0
        %831 = vmatprep.subr.mxu0 0.0
        %832 = vmatpush1.msra.mxu0 0.0
        %833 = vmatprep.subr.mxu0 0.0
        %834 = vmatpush1.msra.mxu0 0.0
        %835 = vmatprep.subr.mxu0 0.0
        %836 = vmatpush1.msra.mxu0 0.0
        %837 = vmatprep.subr.mxu0 0.0
        %838 = vmatpush1.msra.mxu0 0.0
        %839 = vmatprep.subr.mxu0 0.0
        %840 = vmatpush1.msra.mxu0 0.0
        %841 = vmatprep.subr.mxu0 0.0
        %842 = vmatpush1.msra.mxu0 0.0
        %843 = vmatprep.subr.mxu0 0.0
        %844 = vmatpush1.msra.mxu0 0.0
        %845 = vmatprep.subr.mxu0 0.0
        %846 = vmatpush1.msra.mxu0 0.0
        %847 = vmatprep.subr.mxu0 0.0
        %848 = vmatpush1.msra.mxu0 0.0
        %849 = vmatprep.subr.mxu0 0.0
        %850 = vmatpush1.msra.mxu0 0.0
        %851 = vmatprep.subr.mxu0 0.0
        %852 = vmatpush1.msra.mxu0 0.0
        %853 = vmatprep.subr.mxu0 0.0
        %854 = vmatpush1.msra.mxu0 %v821
        %855 = vmatprep.subr.mxu0 0.0
        %856 = vmatpush1.msra.mxu0 %v820
        %857 = vmatprep.subr.mxu0 0.0
        %858 = vmatpush1.msra.mxu0 %v819
        %859 = vmatprep.subr.mxu0 0.0
        %860 = vmatpush1.msra.mxu0 %v818
        %861 = vmatprep.subr.mxu0 0.0
        %862 = vmatpush2.msra.mxu0 0.0
        %863 = vmatprep.subr.mxu0 0.0
        %864 = vmatpush2.msra.mxu0 0.0
        %865 = vmatprep.subr.mxu0 0.0
        %866 = vmatpush2.msra.mxu0 0.0
        %867 = vmatprep.subr.mxu0 0.0
        %868 = vmatpush2.msra.mxu0 0.0
        %869 = vmatprep.subr.mxu0 0.0
        %870 = vmatpush2.msra.mxu0 0.0
        %871 = vmatprep.subr.mxu0 0.0
        %872 = vmatpush2.msra.mxu0 0.0
        %873 = vmatprep.subr.mxu0 0.0
        %874 = vmatpush2.msra.mxu0 0.0
        %875 = vmatprep.subr.mxu0 0.0
        %876 = vmatpush2.msra.mxu0 0.0
        %877 = vmatprep.subr.mxu0 0.0
        %878 = vmatpush2.msra.mxu0 0.0
        %879 = vmatprep.subr.mxu0 0.0
        %880 = vmatpush2.msra.mxu0 0.0
        %881 = vmatprep.subr.mxu0 0.0
        %882 = vmatpush2.msra.mxu0 0.0
        %883 = vmatprep.subr.mxu0 0.0
        %884 = vmatpush2.msra.mxu0 0.0
        %885 = vmatprep.subr.mxu0 0.0
        %886 = vmatpush2.msra.mxu0 0.0
        %887 = vmatprep.subr.mxu0 0.0
        %888 = vmatpush2.msra.mxu0 0.0
        %889 = vmatprep.subr.mxu0 0.0
        %890 = vmatpush2.msra.mxu0 0.0
        %891 = vmatprep.subr.mxu0 0.0
        %892 = vmatpush2.msra.mxu0 0.0
        %893 = vmatprep.mubr.f32.mxu0 0.0
        %894 = vmatmul.mubr.f32.gmra.mxu0 %v746
        %v895 = vpop.f32.mrf.mxu0
        %v896 = vadd.f32 %v827, %v895
        %v897 = vpop.f32.mrf.mxu0
        %898 = vdwg.mxu0
        %v899 = vmul.f32 %v731, 0.35355338
        %vm900 = vcmask 64512
        %v902 = vsel %vm900, %v899, 0
        %v905 = vsel %vm900, %v815, 0
        %907 = vmatprep.subr.mxu0 0.0
        %908 = vmatpush1.xpose.msra.mxu0 0.0
        %909 = vmatprep.subr.mxu0 0.0
        %910 = vmatpush1.xpose.msra.mxu0 0.0
        %911 = vmatprep.subr.mxu0 0.0
        %912 = vmatpush1.xpose.msra.mxu0 0.0
        %913 = vmatprep.subr.mxu0 0.0
        %914 = vmatpush1.xpose.msra.mxu0 0.0
        %915 = vmatprep.subr.mxu0 0.0
        %916 = vmatpush1.xpose.msra.mxu0 0.0
        %917 = vmatprep.subr.mxu0 0.0
        %918 = vmatpush1.xpose.msra.mxu0 0.0
        %919 = vmatprep.subr.mxu0 0.0
        %920 = vmatpush1.xpose.msra.mxu0 0.0
        %921 = vmatprep.subr.mxu0 0.0
        %922 = vmatpush1.xpose.msra.mxu0 0.0
        %923 = vmatprep.subr.mxu0 0.0
        %924 = vmatpush1.xpose.msra.mxu0 0.0
        %925 = vmatprep.subr.mxu0 0.0
        %926 = vmatpush1.xpose.msra.mxu0 0.0
        %927 = vmatprep.subr.mxu0 0.0
        %928 = vmatpush1.xpose.msra.mxu0 0.0
        %929 = vmatprep.subr.mxu0 0.0
        %930 = vmatpush1.xpose.msra.mxu0 0.0
        %931 = vmatprep.subr.mxu0 0.0
        %932 = vmatpush1.xpose.msra.mxu0 0.0
        %933 = vmatprep.subr.mxu0 0.0
        %934 = vmatpush1.xpose.msra.mxu0 0.0
        %935 = vmatprep.subr.mxu0 0.0
        %936 = vmatpush1.xpose.msra.mxu0 0.0
        %937 = vmatprep.subr.mxu0 0.0
        %938 = vmatpush1.xpose.msra.mxu0 %v905
        %939 = vmatprep.subr.mxu0 0.0
        %940 = vmatpush2.xpose.msra.mxu0 0.0
        %941 = vmatprep.subr.mxu0 0.0
        %942 = vmatpush2.xpose.msra.mxu0 0.0
        %943 = vmatprep.subr.mxu0 0.0
        %944 = vmatpush2.xpose.msra.mxu0 0.0
        %945 = vmatprep.subr.mxu0 0.0
        %946 = vmatpush2.xpose.msra.mxu0 0.0
        %947 = vmatprep.subr.mxu0 0.0
        %948 = vmatpush2.xpose.msra.mxu0 0.0
        %949 = vmatprep.subr.mxu0 0.0
        %950 = vmatpush2.xpose.msra.mxu0 0.0
        %951 = vmatprep.subr.mxu0 0.0
        %952 = vmatpush2.xpose.msra.mxu0 0.0
        %953 = vmatprep.subr.mxu0 0.0
        %954 = vmatpush2.xpose.msra.mxu0 0.0
        %955 = vmatprep.subr.mxu0 0.0
        %956 = vmatpush2.xpose.msra.mxu0 0.0
        %957 = vmatprep.subr.mxu0 0.0
        %958 = vmatpush2.xpose.msra.mxu0 0.0
        %959 = vmatprep.subr.mxu0 0.0
        %960 = vmatpush2.xpose.msra.mxu0 0.0
        %961 = vmatprep.subr.mxu0 0.0
        %962 = vmatpush2.xpose.msra.mxu0 0.0
        %963 = vmatprep.subr.mxu0 0.0
        %964 = vmatpush2.xpose.msra.mxu0 0.0
        %965 = vmatprep.subr.mxu0 0.0
        %966 = vmatpush2.xpose.msra.mxu0 0.0
        %967 = vmatprep.subr.mxu0 0.0
        %968 = vmatpush2.xpose.msra.mxu0 0.0
        %969 = vmatprep.subr.mxu0 0.0
        %970 = vmatpush2.xpose.msra.mxu0 0.0
        %971 = vmatprep.mubr.f32.mxu0 0.0
        %972 = vmatmul.mubr.f32.gmra.mxu0 %v902
        %v973 = vpop.f32.mrf.mxu0
        %v974 = vadd.f32 0.0, %v973
        %v975 = vpop.f32.mrf.mxu0
        %976 = vdwg.mxu0
        %v977 = vsel %vm648, -1e+09, %v974
        %v978 = vsel %vm900, %v977, -inf
        %979 = vmax.xlane.f32.xlu0 %v978
        %v980 = vpop.xlane.xlu0 %979
        %v981 = vsub.f32 %v977, %v980
        %v982 = vmul.f32 %v981, 1.442695
        %v983 = vpow.pop %v982
        %v984 = vsel %vm900, %v983, 0.0
        %985 = vadd.xlane.f32.xlu0 %v984
        %v986 = vpop.xlane.xlu0 %985
        %v987 = vrcp.pop %v986
        %v988 = vmul.f32 %v983, %v987
        %989 = vst.msk [vmem:[%s644] sm:$0xff] %vm900, %v988
        %v991 = vsel %vm900, %v988, 0
        %993 = vmatprep.subr.mxu0 0.0
        %994 = vmatpush1.msra.mxu0 0.0
        %995 = vmatprep.subr.mxu0 0.0
        %996 = vmatpush1.msra.mxu0 0.0
        %997 = vmatprep.subr.mxu0 0.0
        %998 = vmatpush1.msra.mxu0 0.0
        %999 = vmatprep.subr.mxu0 0.0
        %1000 = vmatpush1.msra.mxu0 0.0
        %1001 = vmatprep.subr.mxu0 0.0
        %1002 = vmatpush1.msra.mxu0 0.0
        %1003 = vmatprep.subr.mxu0 0.0
        %1004 = vmatpush1.msra.mxu0 0.0
        %1005 = vmatprep.subr.mxu0 0.0
        %1006 = vmatpush1.msra.mxu0 0.0
        %1007 = vmatprep.subr.mxu0 0.0
        %1008 = vmatpush1.msra.mxu0 0.0
        %1009 = vmatprep.subr.mxu0 0.0
        %1010 = vmatpush1.msra.mxu0 0.0
        %1011 = vmatprep.subr.mxu0 0.0
        %1012 = vmatpush1.msra.mxu0 0.0
        %1013 = vmatprep.subr.mxu0 0.0
        %1014 = vmatpush1.msra.mxu0 0.0
        %1015 = vmatprep.subr.mxu0 0.0
        %1016 = vmatpush1.msra.mxu0 0.0
        %1017 = vmatprep.subr.mxu0 0.0
        %1018 = vmatpush1.msra.mxu0 0.0
        %1019 = vmatprep.subr.mxu0 0.0
        %1020 = vmatpush1.msra.mxu0 0.0
        %1021 = vmatprep.subr.mxu0 0.0
        %1022 = vmatpush1.msra.mxu0 0.0
        %1023 = vmatprep.subr.mxu0 0.0
        %1024 = vmatpush1.msra.mxu0 %v896
        %1025 = vmatprep.subr.mxu0 0.0
        %1026 = vmatpush2.msra.mxu0 0.0
        %1027 = vmatprep.subr.mxu0 0.0
        %1028 = vmatpush2.msra.mxu0 0.0
        %1029 = vmatprep.subr.mxu0 0.0
        %1030 = vmatpush2.msra.mxu0 0.0
        %1031 = vmatprep.subr.mxu0 0.0
        %1032 = vmatpush2.msra.mxu0 0.0
        %1033 = vmatprep.subr.mxu0 0.0
        %1034 = vmatpush2.msra.mxu0 0.0
        %1035 = vmatprep.subr.mxu0 0.0
        %1036 = vmatpush2.msra.mxu0 0.0
        %1037 = vmatprep.subr.mxu0 0.0
        %1038 = vmatpush2.msra.mxu0 0.0
        %1039 = vmatprep.subr.mxu0 0.0
        %1040 = vmatpush2.msra.mxu0 0.0
        %1041 = vmatprep.subr.mxu0 0.0
        %1042 = vmatpush2.msra.mxu0 0.0
        %1043 = vmatprep.subr.mxu0 0.0
        %1044 = vmatpush2.msra.mxu0 0.0
        %1045 = vmatprep.subr.mxu0 0.0
        %1046 = vmatpush2.msra.mxu0 0.0
        %1047 = vmatprep.subr.mxu0 0.0
        %1048 = vmatpush2.msra.mxu0 0.0
        %1049 = vmatprep.subr.mxu0 0.0
        %1050 = vmatpush2.msra.mxu0 0.0
        %1051 = vmatprep.subr.mxu0 0.0
        %1052 = vmatpush2.msra.mxu0 0.0
        %1053 = vmatprep.subr.mxu0 0.0
        %1054 = vmatpush2.msra.mxu0 0.0
        %1055 = vmatprep.subr.mxu0 0.0
        %1056 = vmatpush2.msra.mxu0 0.0
        %1057 = vmatprep.mubr.f32.mxu0 0.0
        %1058 = vmatmul.mubr.f32.gmra.mxu0 %v991
        %v1059 = vpop.f32.mrf.mxu0
        %v1060 = vadd.f32 0.0, %v1059
        %v1061 = vpop.f32.mrf.mxu0
        %1062 = vdwg.mxu0
        %v1063 = vld [vmem:[#allocation13] sm:$0xff]
        %1064 = vrot.lane.b32.xlu0 %v899, 120
        %v1065 = vpop.permute.xlu0 %1064
        %1066 = vrot.lane.b32.xlu0 %v815, 120
        %v1067 = vpop.permute.xlu0 %1066
        %v1068 = vsel %vm900, %v1065, 0
        %v1070 = vsel %vm900, %v1067, 0
        %1072 = vmatprep.subr.mxu0 0.0
        %1073 = vmatpush1.xpose.msra.mxu0 0.0
        %1074 = vmatprep.subr.mxu0 0.0
        %1075 = vmatpush1.xpose.msra.mxu0 0.0
        %1076 = vmatprep.subr.mxu0 0.0
        %1077 = vmatpush1.xpose.msra.mxu0 0.0
        %1078 = vmatprep.subr.mxu0 0.0
        %1079 = vmatpush1.xpose.msra.mxu0 0.0
        %1080 = vmatprep.subr.mxu0 0.0
        %1081 = vmatpush1.xpose.msra.mxu0 0.0
        %1082 = vmatprep.subr.mxu0 0.0
        %1083 = vmatpush1.xpose.msra.mxu0 0.0
        %1084 = vmatprep.subr.mxu0 0.0
        %1085 = vmatpush1.xpose.msra.mxu0 0.0
        %1086 = vmatprep.subr.mxu0 0.0
        %1087 = vmatpush1.xpose.msra.mxu0 0.0
        %1088 = vmatprep.subr.mxu0 0.0
        %1089 = vmatpush1.xpose.msra.mxu0 0.0
        %1090 = vmatprep.subr.mxu0 0.0
        %1091 = vmatpush1.xpose.msra.mxu0 0.0
        %1092 = vmatprep.subr.mxu0 0.0
        %1093 = vmatpush1.xpose.msra.mxu0 0.0
        %1094 = vmatprep.subr.mxu0 0.0
        %1095 = vmatpush1.xpose.msra.mxu0 0.0
        %1096 = vmatprep.subr.mxu0 0.0
        %1097 = vmatpush1.xpose.msra.mxu0 0.0
        %1098 = vmatprep.subr.mxu0 0.0
        %1099 = vmatpush1.xpose.msra.mxu0 0.0
        %1100 = vmatprep.subr.mxu0 0.0
        %1101 = vmatpush1.xpose.msra.mxu0 0.0
        %1102 = vmatprep.subr.mxu0 0.0
        %1103 = vmatpush1.xpose.msra.mxu0 %v1070
        %1104 = vmatprep.subr.mxu0 0.0
        %1105 = vmatpush2.xpose.msra.mxu0 0.0
        %1106 = vmatprep.subr.mxu0 0.0
        %1107 = vmatpush2.xpose.msra.mxu0 0.0
        %1108 = vmatprep.subr.mxu0 0.0
        %1109 = vmatpush2.xpose.msra.mxu0 0.0
        %1110 = vmatprep.subr.mxu0 0.0
        %1111 = vmatpush2.xpose.msra.mxu0 0.0
        %1112 = vmatprep.subr.mxu0 0.0
        %1113 = vmatpush2.xpose.msra.mxu0 0.0
        %1114 = vmatprep.subr.mxu0 0.0
        %1115 = vmatpush2.xpose.msra.mxu0 0.0
        %1116 = vmatprep.subr.mxu0 0.0
        %1117 = vmatpush2.xpose.msra.mxu0 0.0
        %1118 = vmatprep.subr.mxu0 0.0
        %1119 = vmatpush2.xpose.msra.mxu0 0.0
        %1120 = vmatprep.subr.mxu0 0.0
        %1121 = vmatpush2.xpose.msra.mxu0 0.0
        %1122 = vmatprep.subr.mxu0 0.0
        %1123 = vmatpush2.xpose.msra.mxu0 0.0
        %1124 = vmatprep.subr.mxu0 0.0
        %1125 = vmatpush2.xpose.msra.mxu0 0.0
        %1126 = vmatprep.subr.mxu0 0.0
        %1127 = vmatpush2.xpose.msra.mxu0 0.0
        %1128 = vmatprep.subr.mxu0 0.0
        %1129 = vmatpush2.xpose.msra.mxu0 0.0
        %1130 = vmatprep.subr.mxu0 0.0
        %1131 = vmatpush2.xpose.msra.mxu0 0.0
        %1132 = vmatprep.subr.mxu0 0.0
        %1133 = vmatpush2.xpose.msra.mxu0 0.0
        %1134 = vmatprep.subr.mxu0 0.0
        %1135 = vmatpush2.xpose.msra.mxu0 0.0
        %1136 = vmatprep.mubr.f32.mxu0 0.0
        %1137 = vmatmul.mubr.f32.gmra.mxu0 %v1068
        %v1138 = vpop.f32.mrf.mxu0
        %v1139 = vadd.f32 0.0, %v1138
        %v1140 = vpop.f32.mrf.mxu0
        %1141 = vdwg.mxu0
        %v1142 = vsel %vm648, -1e+09, %v1139
        %v1143 = vsel %vm900, %v1142, -inf
        %1144 = vmax.xlane.f32.xlu0 %v1143
        %v1145 = vpop.xlane.xlu0 %1144
        %v1146 = vsub.f32 %v1142, %v1145
        %v1147 = vmul.f32 %v1146, 1.442695
        %v1148 = vpow.pop %v1147
        %v1149 = vsel %vm900, %v1148, 0.0
        %1150 = vadd.xlane.f32.xlu0 %v1149
        %v1151 = vpop.xlane.xlu0 %1150
        %v1152 = vrcp.pop %v1151
        %v1153 = vmul.f32 %v1148, %v1152
        %s1154 = scalar_lea.vmem %s644, 8 [#allocation15]
        %1155 = vst.msk [vmem:[%s1154] sm:$0xff] %vm900, %v1153
        %1157 = vrot.lane.b32.xlu0 %v896, 120
        %v1158 = vpop.permute.xlu0 %1157
        %v1161 = vsel %vm900, %v1153, 0
        %1163 = vmatprep.subr.mxu0 0.0
        %1164 = vmatpush1.msra.mxu0 0.0
        %1165 = vmatprep.subr.mxu0 0.0
        %1166 = vmatpush1.msra.mxu0 0.0
        %1167 = vmatprep.subr.mxu0 0.0
        %1168 = vmatpush1.msra.mxu0 0.0
        %1169 = vmatprep.subr.mxu0 0.0
        %1170 = vmatpush1.msra.mxu0 0.0
        %1171 = vmatprep.subr.mxu0 0.0
        %1172 = vmatpush1.msra.mxu0 0.0
        %1173 = vmatprep.subr.mxu0 0.0
        %1174 = vmatpush1.msra.mxu0 0.0
        %1175 = vmatprep.subr.mxu0 0.0
        %1176 = vmatpush1.msra.mxu0 0.0
        %1177 = vmatprep.subr.mxu0 0.0
        %1178 = vmatpush1.msra.mxu0 0.0
        %1179 = vmatprep.subr.mxu0 0.0
        %1180 = vmatpush1.msra.mxu0 0.0
        %1181 = vmatprep.subr.mxu0 0.0
        %1182 = vmatpush1.msra.mxu0 0.0
        %1183 = vmatprep.subr.mxu0 0.0
        %1184 = vmatpush1.msra.mxu0 0.0
        %1185 = vmatprep.subr.mxu0 0.0
        %1186 = vmatpush1.msra.mxu0 0.0
        %1187 = vmatprep.subr.mxu0 0.0
        %1188 = vmatpush1.msra.mxu0 0.0
        %1189 = vmatprep.subr.mxu0 0.0
        %1190 = vmatpush1.msra.mxu0 0.0
        %1191 = vmatprep.subr.mxu0 0.0
        %1192 = vmatpush1.msra.mxu0 0.0
        %1193 = vmatprep.subr.mxu0 0.0
        %1194 = vmatpush1.msra.mxu0 %v1158
        %1195 = vmatprep.subr.mxu0 0.0
        %1196 = vmatpush2.msra.mxu0 0.0
        %1197 = vmatprep.subr.mxu0 0.0
        %1198 = vmatpush2.msra.mxu0 0.0
        %1199 = vmatprep.subr.mxu0 0.0
        %1200 = vmatpush2.msra.mxu0 0.0
        %1201 = vmatprep.subr.mxu0 0.0
        %1202 = vmatpush2.msra.mxu0 0.0
        %1203 = vmatprep.subr.mxu0 0.0
        %1204 = vmatpush2.msra.mxu0 0.0
        %1205 = vmatprep.subr.mxu0 0.0
        %1206 = vmatpush2.msra.mxu0 0.0
        %1207 = vmatprep.subr.mxu0 0.0
        %1208 = vmatpush2.msra.mxu0 0.0
        %1209 = vmatprep.subr.mxu0 0.0
        %1210 = vmatpush2.msra.mxu0 0.0
        %1211 = vmatprep.subr.mxu0 0.0
        %1212 = vmatpush2.msra.mxu0 0.0
        %1213 = vmatprep.subr.mxu0 0.0
        %1214 = vmatpush2.msra.mxu0 0.0
        %1215 = vmatprep.subr.mxu0 0.0
        %1216 = vmatpush2.msra.mxu0 0.0
        %1217 = vmatprep.subr.mxu0 0.0
        %1218 = vmatpush2.msra.mxu0 0.0
        %1219 = vmatprep.subr.mxu0 0.0
        %1220 = vmatpush2.msra.mxu0 0.0
        %1221 = vmatprep.subr.mxu0 0.0
        %1222 = vmatpush2.msra.mxu0 0.0
        %1223 = vmatprep.subr.mxu0 0.0
        %1224 = vmatpush2.msra.mxu0 0.0
        %1225 = vmatprep.subr.mxu0 0.0
        %1226 = vmatpush2.msra.mxu0 0.0
        %1227 = vmatprep.mubr.f32.mxu0 0.0
        %1228 = vmatmul.mubr.f32.gmra.mxu0 %v1161
        %v1229 = vpop.f32.mrf.mxu0
        %v1230 = vadd.f32 0.0, %v1229
        %v1231 = vpop.f32.mrf.mxu0
        %1232 = vdwg.mxu0
        %v1233 = vld [vmem:[#allocation13 + $0x8] sm:$0xff]
        %v1235 = vsel %vm900, %v1230, 0
        %1237 = vmatprep.subr.mxu0 0.0
        %1238 = vmatpush1.msra.mxu0 0.0
        %1239 = vmatprep.subr.mxu0 0.0
        %1240 = vmatpush1.msra.mxu0 0.0
        %1241 = vmatprep.subr.mxu0 0.0
        %1242 = vmatpush1.msra.mxu0 0.0
        %1243 = vmatprep.subr.mxu0 0.0
        %1244 = vmatpush1.msra.mxu0 0.0
        %1245 = vmatprep.subr.mxu0 0.0
        %1246 = vmatpush1.msra.mxu0 0.0
        %1247 = vmatprep.subr.mxu0 0.0
        %1248 = vmatpush1.msra.mxu0 0.0
        %1249 = vmatprep.subr.mxu0 0.0
        %1250 = vmatpush1.msra.mxu0 0.0
        %1251 = vmatprep.subr.mxu0 0.0
        %1252 = vmatpush1.msra.mxu0 0.0
        %1253 = vmatprep.subr.mxu0 0.0
        %1254 = vmatpush1.msra.mxu0 0.0
        %1255 = vmatprep.subr.mxu0 0.0
        %1256 = vmatpush1.msra.mxu0 0.0
        %1257 = vmatprep.subr.mxu0 0.0
        %1258 = vmatpush1.msra.mxu0 0.0
        %1259 = vmatprep.subr.mxu0 0.0
        %1260 = vmatpush1.msra.mxu0 0.0
        %1261 = vmatprep.subr.mxu0 0.0
        %1262 = vmatpush1.msra.mxu0 0.0
        %1263 = vmatprep.subr.mxu0 0.0
        %1264 = vmatpush1.msra.mxu0 0.0
        %1265 = vmatprep.subr.mxu0 0.0
        %1266 = vmatpush1.msra.mxu0 0.0
        %1267 = vmatprep.subr.mxu0 0.0
        %1268 = vmatpush1.msra.mxu0 %v1233
        %1269 = vmatprep.subr.mxu0 0.0
        %1270 = vmatpush2.msra.mxu0 0.0
        %1271 = vmatprep.subr.mxu0 0.0
        %1272 = vmatpush2.msra.mxu0 0.0
        %1273 = vmatprep.subr.mxu0 0.0
        %1274 = vmatpush2.msra.mxu0 0.0
        %1275 = vmatprep.subr.mxu0 0.0
        %1276 = vmatpush2.msra.mxu0 0.0
        %1277 = vmatprep.subr.mxu0 0.0
        %1278 = vmatpush2.msra.mxu0 0.0
        %1279 = vmatprep.subr.mxu0 0.0
        %1280 = vmatpush2.msra.mxu0 0.0
        %1281 = vmatprep.subr.mxu0 0.0
        %1282 = vmatpush2.msra.mxu0 0.0
        %1283 = vmatprep.subr.mxu0 0.0
        %1284 = vmatpush2.msra.mxu0 0.0
        %1285 = vmatprep.subr.mxu0 0.0
        %1286 = vmatpush2.msra.mxu0 0.0
        %1287 = vmatprep.subr.mxu0 0.0
        %1288 = vmatpush2.msra.mxu0 0.0
        %1289 = vmatprep.subr.mxu0 0.0
        %1290 = vmatpush2.msra.mxu0 0.0
        %1291 = vmatprep.subr.mxu0 0.0
        %1292 = vmatpush2.msra.mxu0 0.0
        %1293 = vmatprep.subr.mxu0 0.0
        %1294 = vmatpush2.msra.mxu0 0.0
        %1295 = vmatprep.subr.mxu0 0.0
        %1296 = vmatpush2.msra.mxu0 0.0
        %1297 = vmatprep.subr.mxu0 0.0
        %1298 = vmatpush2.msra.mxu0 0.0
        %1299 = vmatprep.subr.mxu0 0.0
        %1300 = vmatpush2.msra.mxu0 0.0
        %1301 = vmatprep.mubr.f32.mxu0 0.0
        %1302 = vmatmul.mubr.f32.gmra.mxu0 %v1235
        %v1303 = vpop.f32.mrf.mxu0
        %v1304 = vadd.f32 0.0, %v1303
        %v1305 = vpop.f32.mrf.mxu0
        %1306 = vdwg.mxu0
        %v1308 = vsel %vm900, %v1060, 0
        %1310 = vmatprep.subr.mxu0 0.0
        %1311 = vmatpush1.msra.mxu0 0.0
        %1312 = vmatprep.subr.mxu0 0.0
        %1313 = vmatpush1.msra.mxu0 0.0
        %1314 = vmatprep.subr.mxu0 0.0
        %1315 = vmatpush1.msra.mxu0 0.0
        %1316 = vmatprep.subr.mxu0 0.0
        %1317 = vmatpush1.msra.mxu0 0.0
        %1318 = vmatprep.subr.mxu0 0.0
        %1319 = vmatpush1.msra.mxu0 0.0
        %1320 = vmatprep.subr.mxu0 0.0
        %1321 = vmatpush1.msra.mxu0 0.0
        %1322 = vmatprep.subr.mxu0 0.0
        %1323 = vmatpush1.msra.mxu0 0.0
        %1324 = vmatprep.subr.mxu0 0.0
        %1325 = vmatpush1.msra.mxu0 0.0
        %1326 = vmatprep.subr.mxu0 0.0
        %1327 = vmatpush1.msra.mxu0 0.0
        %1328 = vmatprep.subr.mxu0 0.0
        %1329 = vmatpush1.msra.mxu0 0.0
        %1330 = vmatprep.subr.mxu0 0.0
        %1331 = vmatpush1.msra.mxu0 0.0
        %1332 = vmatprep.subr.mxu0 0.0
        %1333 = vmatpush1.msra.mxu0 0.0
        %1334 = vmatprep.subr.mxu0 0.0
        %1335 = vmatpush1.msra.mxu0 0.0
        %1336 = vmatprep.subr.mxu0 0.0
        %1337 = vmatpush1.msra.mxu0 0.0
        %1338 = vmatprep.subr.mxu0 0.0
        %1339 = vmatpush1.msra.mxu0 0.0
        %1340 = vmatprep.subr.mxu0 0.0
        %1341 = vmatpush1.msra.mxu0 %v1063
        %1342 = vmatprep.subr.mxu0 0.0
        %1343 = vmatpush2.msra.mxu0 0.0
        %1344 = vmatprep.subr.mxu0 0.0
        %1345 = vmatpush2.msra.mxu0 0.0
        %1346 = vmatprep.subr.mxu0 0.0
        %1347 = vmatpush2.msra.mxu0 0.0
        %1348 = vmatprep.subr.mxu0 0.0
        %1349 = vmatpush2.msra.mxu0 0.0
        %1350 = vmatprep.subr.mxu0 0.0
        %1351 = vmatpush2.msra.mxu0 0.0
        %1352 = vmatprep.subr.mxu0 0.0
        %1353 = vmatpush2.msra.mxu0 0.0
        %1354 = vmatprep.subr.mxu0 0.0
        %1355 = vmatpush2.msra.mxu0 0.0
        %1356 = vmatprep.subr.mxu0 0.0
        %1357 = vmatpush2.msra.mxu0 0.0
        %1358 = vmatprep.subr.mxu0 0.0
        %1359 = vmatpush2.msra.mxu0 0.0
        %1360 = vmatprep.subr.mxu0 0.0
        %1361 = vmatpush2.msra.mxu0 0.0
        %1362 = vmatprep.subr.mxu0 0.0
        %1363 = vmatpush2.msra.mxu0 0.0
        %1364 = vmatprep.subr.mxu0 0.0
        %1365 = vmatpush2.msra.mxu0 0.0
        %1366 = vmatprep.subr.mxu0 0.0
        %1367 = vmatpush2.msra.mxu0 0.0
        %1368 = vmatprep.subr.mxu0 0.0
        %1369 = vmatpush2.msra.mxu0 0.0
        %1370 = vmatprep.subr.mxu0 0.0
        %1371 = vmatpush2.msra.mxu0 0.0
        %1372 = vmatprep.subr.mxu0 0.0
        %1373 = vmatpush2.msra.mxu0 0.0
        %1374 = vmatprep.mubr.f32.mxu0 0.0
        %1375 = vmatmul.mubr.f32.gmra.mxu0 %v1308
        %v1376 = vpop.f32.mrf.mxu0
        %v1377 = vadd.f32 %v1304, %v1376
        %v1378 = vpop.f32.mrf.mxu0
        %1379 = vdwg.mxu0
        %1380 = vrot.lane.b32.xlu0 %v899, 112
        %v1381 = vpop.permute.xlu0 %1380
        %1382 = vrot.lane.b32.xlu0 %v815, 112
        %v1383 = vpop.permute.xlu0 %1382
        %v1384 = vsel %vm900, %v1381, 0
        %v1386 = vsel %vm900, %v1383, 0
        %1388 = vmatprep.subr.mxu0 0.0
        %1389 = vmatpush1.xpose.msra.mxu0 0.0
        %1390 = vmatprep.subr.mxu0 0.0
        %1391 = vmatpush1.xpose.msra.mxu0 0.0
        %1392 = vmatprep.subr.mxu0 0.0
        %1393 = vmatpush1.xpose.msra.mxu0 0.0
        %1394 = vmatprep.subr.mxu0 0.0
        %1395 = vmatpush1.xpose.msra.mxu0 0.0
        %1396 = vmatprep.subr.mxu0 0.0
        %1397 = vmatpush1.xpose.msra.mxu0 0.0
        %1398 = vmatprep.subr.mxu0 0.0
        %1399 = vmatpush1.xpose.msra.mxu0 0.0
        %1400 = vmatprep.subr.mxu0 0.0
        %1401 = vmatpush1.xpose.msra.mxu0 0.0
        %1402 = vmatprep.subr.mxu0 0.0
        %1403 = vmatpush1.xpose.msra.mxu0 0.0
        %1404 = vmatprep.subr.mxu0 0.0
        %1405 = vmatpush1.xpose.msra.mxu0 0.0
        %1406 = vmatprep.subr.mxu0 0.0
        %1407 = vmatpush1.xpose.msra.mxu0 0.0
        %1408 = vmatprep.subr.mxu0 0.0
        %1409 = vmatpush1.xpose.msra.mxu0 0.0
        %1410 = vmatprep.subr.mxu0 0.0
        %1411 = vmatpush1.xpose.msra.mxu0 0.0
        %1412 = vmatprep.subr.mxu0 0.0
        %1413 = vmatpush1.xpose.msra.mxu0 0.0
        %1414 = vmatprep.subr.mxu0 0.0
        %1415 = vmatpush1.xpose.msra.mxu0 0.0
        %1416 = vmatprep.subr.mxu0 0.0
        %1417 = vmatpush1.xpose.msra.mxu0 0.0
        %1418 = vmatprep.subr.mxu0 0.0
        %1419 = vmatpush1.xpose.msra.mxu0 %v1386
        %1420 = vmatprep.subr.mxu0 0.0
        %1421 = vmatpush2.xpose.msra.mxu0 0.0
        %1422 = vmatprep.subr.mxu0 0.0
        %1423 = vmatpush2.xpose.msra.mxu0 0.0
        %1424 = vmatprep.subr.mxu0 0.0
        %1425 = vmatpush2.xpose.msra.mxu0 0.0
        %1426 = vmatprep.subr.mxu0 0.0
        %1427 = vmatpush2.xpose.msra.mxu0 0.0
        %1428 = vmatprep.subr.mxu0 0.0
        %1429 = vmatpush2.xpose.msra.mxu0 0.0
        %1430 = vmatprep.subr.mxu0 0.0
        %1431 = vmatpush2.xpose.msra.mxu0 0.0
        %1432 = vmatprep.subr.mxu0 0.0
        %1433 = vmatpush2.xpose.msra.mxu0 0.0
        %1434 = vmatprep.subr.mxu0 0.0
        %1435 = vmatpush2.xpose.msra.mxu0 0.0
        %1436 = vmatprep.subr.mxu0 0.0
        %1437 = vmatpush2.xpose.msra.mxu0 0.0
        %1438 = vmatprep.subr.mxu0 0.0
        %1439 = vmatpush2.xpose.msra.mxu0 0.0
        %1440 = vmatprep.subr.mxu0 0.0
        %1441 = vmatpush2.xpose.msra.mxu0 0.0
        %1442 = vmatprep.subr.mxu0 0.0
        %1443 = vmatpush2.xpose.msra.mxu0 0.0
        %1444 = vmatprep.subr.mxu0 0.0
        %1445 = vmatpush2.xpose.msra.mxu0 0.0
        %1446 = vmatprep.subr.mxu0 0.0
        %1447 = vmatpush2.xpose.msra.mxu0 0.0
        %1448 = vmatprep.subr.mxu0 0.0
        %1449 = vmatpush2.xpose.msra.mxu0 0.0
        %1450 = vmatprep.subr.mxu0 0.0
        %1451 = vmatpush2.xpose.msra.mxu0 0.0
        %1452 = vmatprep.mubr.f32.mxu0 0.0
        %1453 = vmatmul.mubr.f32.gmra.mxu0 %v1384
        %v1454 = vpop.f32.mrf.mxu0
        %v1455 = vadd.f32 0.0, %v1454
        %v1456 = vpop.f32.mrf.mxu0
        %1457 = vdwg.mxu0
        %v1458 = vsel %vm648, -1e+09, %v1455
        %v1459 = vsel %vm900, %v1458, -inf
        %1460 = vmax.xlane.f32.xlu0 %v1459
        %v1461 = vpop.xlane.xlu0 %1460
        %v1462 = vsub.f32 %v1458, %v1461
        %v1463 = vmul.f32 %v1462, 1.442695
        %v1464 = vpow.pop %v1463
        %v1465 = vsel %vm900, %v1464, 0.0
        %1466 = vadd.xlane.f32.xlu0 %v1465
        %v1467 = vpop.xlane.xlu0 %1466
        %v1468 = vrcp.pop %v1467
        %v1469 = vmul.f32 %v1464, %v1468
        %s1470 = scalar_lea.vmem %s644, 16 [#allocation15]
        %1471 = vst.msk [vmem:[%s1470] sm:$0xff] %vm900, %v1469
        %1472 = vrot.lane.b32.xlu0 %v896, 112
        %v1473 = vpop.permute.xlu0 %1472
        %v1476 = vsel %vm900, %v1469, 0
        %1478 = vmatprep.subr.mxu0 0.0
        %1479 = vmatpush1.msra.mxu0 0.0
        %1480 = vmatprep.subr.mxu0 0.0
        %1481 = vmatpush1.msra.mxu0 0.0
        %1482 = vmatprep.subr.mxu0 0.0
        %1483 = vmatpush1.msra.mxu0 0.0
        %1484 = vmatprep.subr.mxu0 0.0
        %1485 = vmatpush1.msra.mxu0 0.0
        %1486 = vmatprep.subr.mxu0 0.0
        %1487 = vmatpush1.msra.mxu0 0.0
        %1488 = vmatprep.subr.mxu0 0.0
        %1489 = vmatpush1.msra.mxu0 0.0
        %1490 = vmatprep.subr.mxu0 0.0
        %1491 = vmatpush1.msra.mxu0 0.0
        %1492 = vmatprep.subr.mxu0 0.0
        %1493 = vmatpush1.msra.mxu0 0.0
        %1494 = vmatprep.subr.mxu0 0.0
        %1495 = vmatpush1.msra.mxu0 0.0
        %1496 = vmatprep.subr.mxu0 0.0
        %1497 = vmatpush1.msra.mxu0 0.0
        %1498 = vmatprep.subr.mxu0 0.0
        %1499 = vmatpush1.msra.mxu0 0.0
        %1500 = vmatprep.subr.mxu0 0.0
        %1501 = vmatpush1.msra.mxu0 0.0
        %1502 = vmatprep.subr.mxu0 0.0
        %1503 = vmatpush1.msra.mxu0 0.0
        %1504 = vmatprep.subr.mxu0 0.0
        %1505 = vmatpush1.msra.mxu0 0.0
        %1506 = vmatprep.subr.mxu0 0.0
        %1507 = vmatpush1.msra.mxu0 0.0
        %1508 = vmatprep.subr.mxu0 0.0
        %1509 = vmatpush1.msra.mxu0 %v1473
        %1510 = vmatprep.subr.mxu0 0.0
        %1511 = vmatpush2.msra.mxu0 0.0
        %1512 = vmatprep.subr.mxu0 0.0
        %1513 = vmatpush2.msra.mxu0 0.0
        %1514 = vmatprep.subr.mxu0 0.0
        %1515 = vmatpush2.msra.mxu0 0.0
        %1516 = vmatprep.subr.mxu0 0.0
        %1517 = vmatpush2.msra.mxu0 0.0
        %1518 = vmatprep.subr.mxu0 0.0
        %1519 = vmatpush2.msra.mxu0 0.0
        %1520 = vmatprep.subr.mxu0 0.0
        %1521 = vmatpush2.msra.mxu0 0.0
        %1522 = vmatprep.subr.mxu0 0.0
        %1523 = vmatpush2.msra.mxu0 0.0
        %1524 = vmatprep.subr.mxu0 0.0
        %1525 = vmatpush2.msra.mxu0 0.0
        %1526 = vmatprep.subr.mxu0 0.0
        %1527 = vmatpush2.msra.mxu0 0.0
        %1528 = vmatprep.subr.mxu0 0.0
        %1529 = vmatpush2.msra.mxu0 0.0
        %1530 = vmatprep.subr.mxu0 0.0
        %1531 = vmatpush2.msra.mxu0 0.0
        %1532 = vmatprep.subr.mxu0 0.0
        %1533 = vmatpush2.msra.mxu0 0.0
        %1534 = vmatprep.subr.mxu0 0.0
        %1535 = vmatpush2.msra.mxu0 0.0
        %1536 = vmatprep.subr.mxu0 0.0
        %1537 = vmatpush2.msra.mxu0 0.0
        %1538 = vmatprep.subr.mxu0 0.0
        %1539 = vmatpush2.msra.mxu0 0.0
        %1540 = vmatprep.subr.mxu0 0.0
        %1541 = vmatpush2.msra.mxu0 0.0
        %1542 = vmatprep.mubr.f32.mxu0 0.0
        %1543 = vmatmul.mubr.f32.gmra.mxu0 %v1476
        %v1544 = vpop.f32.mrf.mxu0
        %v1545 = vadd.f32 0.0, %v1544
        %v1546 = vpop.f32.mrf.mxu0
        %1547 = vdwg.mxu0
        %v1548 = vld [vmem:[#allocation13 + $0x10] sm:$0xff]
        %v1550 = vsel %vm900, %v1545, 0
        %1552 = vmatprep.subr.mxu0 0.0
        %1553 = vmatpush1.msra.mxu0 0.0
        %1554 = vmatprep.subr.mxu0 0.0
        %1555 = vmatpush1.msra.mxu0 0.0
        %1556 = vmatprep.subr.mxu0 0.0
        %1557 = vmatpush1.msra.mxu0 0.0
        %1558 = vmatprep.subr.mxu0 0.0
        %1559 = vmatpush1.msra.mxu0 0.0
        %1560 = vmatprep.subr.mxu0 0.0
        %1561 = vmatpush1.msra.mxu0 0.0
        %1562 = vmatprep.subr.mxu0 0.0
        %1563 = vmatpush1.msra.mxu0 0.0
        %1564 = vmatprep.subr.mxu0 0.0
        %1565 = vmatpush1.msra.mxu0 0.0
        %1566 = vmatprep.subr.mxu0 0.0
        %1567 = vmatpush1.msra.mxu0 0.0
        %1568 = vmatprep.subr.mxu0 0.0
        %1569 = vmatpush1.msra.mxu0 0.0
        %1570 = vmatprep.subr.mxu0 0.0
        %1571 = vmatpush1.msra.mxu0 0.0
        %1572 = vmatprep.subr.mxu0 0.0
        %1573 = vmatpush1.msra.mxu0 0.0
        %1574 = vmatprep.subr.mxu0 0.0
        %1575 = vmatpush1.msra.mxu0 0.0
        %1576 = vmatprep.subr.mxu0 0.0
        %1577 = vmatpush1.msra.mxu0 0.0
        %1578 = vmatprep.subr.mxu0 0.0
        %1579 = vmatpush1.msra.mxu0 0.0
        %1580 = vmatprep.subr.mxu0 0.0
        %1581 = vmatpush1.msra.mxu0 0.0
        %1582 = vmatprep.subr.mxu0 0.0
        %1583 = vmatpush1.msra.mxu0 %v1548
        %1584 = vmatprep.subr.mxu0 0.0
        %1585 = vmatpush2.msra.mxu0 0.0
        %1586 = vmatprep.subr.mxu0 0.0
        %1587 = vmatpush2.msra.mxu0 0.0
        %1588 = vmatprep.subr.mxu0 0.0
        %1589 = vmatpush2.msra.mxu0 0.0
        %1590 = vmatprep.subr.mxu0 0.0
        %1591 = vmatpush2.msra.mxu0 0.0
        %1592 = vmatprep.subr.mxu0 0.0
        %1593 = vmatpush2.msra.mxu0 0.0
        %1594 = vmatprep.subr.mxu0 0.0
        %1595 = vmatpush2.msra.mxu0 0.0
        %1596 = vmatprep.subr.mxu0 0.0
        %1597 = vmatpush2.msra.mxu0 0.0
        %1598 = vmatprep.subr.mxu0 0.0
        %1599 = vmatpush2.msra.mxu0 0.0
        %1600 = vmatprep.subr.mxu0 0.0
        %1601 = vmatpush2.msra.mxu0 0.0
        %1602 = vmatprep.subr.mxu0 0.0
        %1603 = vmatpush2.msra.mxu0 0.0
        %1604 = vmatprep.subr.mxu0 0.0
        %1605 = vmatpush2.msra.mxu0 0.0
        %1606 = vmatprep.subr.mxu0 0.0
        %1607 = vmatpush2.msra.mxu0 0.0
        %1608 = vmatprep.subr.mxu0 0.0
        %1609 = vmatpush2.msra.mxu0 0.0
        %1610 = vmatprep.subr.mxu0 0.0
        %1611 = vmatpush2.msra.mxu0 0.0
        %1612 = vmatprep.subr.mxu0 0.0
        %1613 = vmatpush2.msra.mxu0 0.0
        %1614 = vmatprep.subr.mxu0 0.0
        %1615 = vmatpush2.msra.mxu0 0.0
        %1616 = vmatprep.mubr.f32.mxu0 0.0
        %1617 = vmatmul.mubr.f32.gmra.mxu0 %v1550
        %v1618 = vpop.f32.mrf.mxu0
        %v1619 = vadd.f32 0.0, %v1618
        %v1620 = vpop.f32.mrf.mxu0
        %1621 = vdwg.mxu0
        %v1622 = vadd.f32 %v1377, %v1619
        %1623 = vrot.lane.b32.xlu0 %v899, 104
        %v1624 = vpop.permute.xlu0 %1623
        %1625 = vrot.lane.b32.xlu0 %v815, 104
        %v1626 = vpop.permute.xlu0 %1625
        %v1627 = vsel %vm900, %v1624, 0
        %v1629 = vsel %vm900, %v1626, 0
        %1631 = vmatprep.subr.mxu0 0.0
        %1632 = vmatpush1.xpose.msra.mxu0 0.0
        %1633 = vmatprep.subr.mxu0 0.0
        %1634 = vmatpush1.xpose.msra.mxu0 0.0
        %1635 = vmatprep.subr.mxu0 0.0
        %1636 = vmatpush1.xpose.msra.mxu0 0.0
        %1637 = vmatprep.subr.mxu0 0.0
        %1638 = vmatpush1.xpose.msra.mxu0 0.0
        %1639 = vmatprep.subr.mxu0 0.0
        %1640 = vmatpush1.xpose.msra.mxu0 0.0
        %1641 = vmatprep.subr.mxu0 0.0
        %1642 = vmatpush1.xpose.msra.mxu0 0.0
        %1643 = vmatprep.subr.mxu0 0.0
        %1644 = vmatpush1.xpose.msra.mxu0 0.0
        %1645 = vmatprep.subr.mxu0 0.0
        %1646 = vmatpush1.xpose.msra.mxu0 0.0
        %1647 = vmatprep.subr.mxu0 0.0
        %1648 = vmatpush1.xpose.msra.mxu0 0.0
        %1649 = vmatprep.subr.mxu0 0.0
        %1650 = vmatpush1.xpose.msra.mxu0 0.0
        %1651 = vmatprep.subr.mxu0 0.0
        %1652 = vmatpush1.xpose.msra.mxu0 0.0
        %1653 = vmatprep.subr.mxu0 0.0
        %1654 = vmatpush1.xpose.msra.mxu0 0.0
        %1655 = vmatprep.subr.mxu0 0.0
        %1656 = vmatpush1.xpose.msra.mxu0 0.0
        %1657 = vmatprep.subr.mxu0 0.0
        %1658 = vmatpush1.xpose.msra.mxu0 0.0
        %1659 = vmatprep.subr.mxu0 0.0
        %1660 = vmatpush1.xpose.msra.mxu0 0.0
        %1661 = vmatprep.subr.mxu0 0.0
        %1662 = vmatpush1.xpose.msra.mxu0 %v1629
        %1663 = vmatprep.subr.mxu0 0.0
        %1664 = vmatpush2.xpose.msra.mxu0 0.0
        %1665 = vmatprep.subr.mxu0 0.0
        %1666 = vmatpush2.xpose.msra.mxu0 0.0
        %1667 = vmatprep.subr.mxu0 0.0
        %1668 = vmatpush2.xpose.msra.mxu0 0.0
        %1669 = vmatprep.subr.mxu0 0.0
        %1670 = vmatpush2.xpose.msra.mxu0 0.0
        %1671 = vmatprep.subr.mxu0 0.0
        %1672 = vmatpush2.xpose.msra.mxu0 0.0
        %1673 = vmatprep.subr.mxu0 0.0
        %1674 = vmatpush2.xpose.msra.mxu0 0.0
        %1675 = vmatprep.subr.mxu0 0.0
        %1676 = vmatpush2.xpose.msra.mxu0 0.0
        %1677 = vmatprep.subr.mxu0 0.0
        %1678 = vmatpush2.xpose.msra.mxu0 0.0
        %1679 = vmatprep.subr.mxu0 0.0
        %1680 = vmatpush2.xpose.msra.mxu0 0.0
        %1681 = vmatprep.subr.mxu0 0.0
        %1682 = vmatpush2.xpose.msra.mxu0 0.0
        %1683 = vmatprep.subr.mxu0 0.0
        %1684 = vmatpush2.xpose.msra.mxu0 0.0
        %1685 = vmatprep.subr.mxu0 0.0
        %1686 = vmatpush2.xpose.msra.mxu0 0.0
        %1687 = vmatprep.subr.mxu0 0.0
        %1688 = vmatpush2.xpose.msra.mxu0 0.0
        %1689 = vmatprep.subr.mxu0 0.0
        %1690 = vmatpush2.xpose.msra.mxu0 0.0
        %1691 = vmatprep.subr.mxu0 0.0
        %1692 = vmatpush2.xpose.msra.mxu0 0.0
        %1693 = vmatprep.subr.mxu0 0.0
        %1694 = vmatpush2.xpose.msra.mxu0 0.0
        %1695 = vmatprep.mubr.f32.mxu0 0.0
        %1696 = vmatmul.mubr.f32.gmra.mxu0 %v1627
        %v1697 = vpop.f32.mrf.mxu0
        %v1698 = vadd.f32 0.0, %v1697
        %v1699 = vpop.f32.mrf.mxu0
        %1700 = vdwg.mxu0
        %v1701 = vsel %vm648, -1e+09, %v1698
        %v1702 = vsel %vm900, %v1701, -inf
        %1703 = vmax.xlane.f32.xlu0 %v1702
        %v1704 = vpop.xlane.xlu0 %1703
        %v1705 = vsub.f32 %v1701, %v1704
        %v1706 = vmul.f32 %v1705, 1.442695
        %v1707 = vpow.pop %v1706
        %v1708 = vsel %vm900, %v1707, 0.0
        %1709 = vadd.xlane.f32.xlu0 %v1708
        %v1710 = vpop.xlane.xlu0 %1709
        %v1711 = vrcp.pop %v1710
        %v1712 = vmul.f32 %v1707, %v1711
        %s1713 = scalar_lea.vmem %s644, 24 [#allocation15]
        %1714 = vst.msk [vmem:[%s1713] sm:$0xff] %vm900, %v1712
        %1715 = vrot.lane.b32.xlu0 %v896, 104
        %v1716 = vpop.permute.xlu0 %1715
        %v1719 = vsel %vm900, %v1712, 0
        %1721 = vmatprep.subr.mxu0 0.0
        %1722 = vmatpush1.msra.mxu0 0.0
        %1723 = vmatprep.subr.mxu0 0.0
        %1724 = vmatpush1.msra.mxu0 0.0
        %1725 = vmatprep.subr.mxu0 0.0
        %1726 = vmatpush1.msra.mxu0 0.0
        %1727 = vmatprep.subr.mxu0 0.0
        %1728 = vmatpush1.msra.mxu0 0.0
        %1729 = vmatprep.subr.mxu0 0.0
        %1730 = vmatpush1.msra.mxu0 0.0
        %1731 = vmatprep.subr.mxu0 0.0
        %1732 = vmatpush1.msra.mxu0 0.0
        %1733 = vmatprep.subr.mxu0 0.0
        %1734 = vmatpush1.msra.mxu0 0.0
        %1735 = vmatprep.subr.mxu0 0.0
        %1736 = vmatpush1.msra.mxu0 0.0
        %1737 = vmatprep.subr.mxu0 0.0
        %1738 = vmatpush1.msra.mxu0 0.0
        %1739 = vmatprep.subr.mxu0 0.0
        %1740 = vmatpush1.msra.mxu0 0.0
        %1741 = vmatprep.subr.mxu0 0.0
        %1742 = vmatpush1.msra.mxu0 0.0
        %1743 = vmatprep.subr.mxu0 0.0
        %1744 = vmatpush1.msra.mxu0 0.0
        %1745 = vmatprep.subr.mxu0 0.0
        %1746 = vmatpush1.msra.mxu0 0.0
        %1747 = vmatprep.subr.mxu0 0.0
        %1748 = vmatpush1.msra.mxu0 0.0
        %1749 = vmatprep.subr.mxu0 0.0
        %1750 = vmatpush1.msra.mxu0 0.0
        %1751 = vmatprep.subr.mxu0 0.0
        %1752 = vmatpush1.msra.mxu0 %v1716
        %1753 = vmatprep.subr.mxu0 0.0
        %1754 = vmatpush2.msra.mxu0 0.0
        %1755 = vmatprep.subr.mxu0 0.0
        %1756 = vmatpush2.msra.mxu0 0.0
        %1757 = vmatprep.subr.mxu0 0.0
        %1758 = vmatpush2.msra.mxu0 0.0
        %1759 = vmatprep.subr.mxu0 0.0
        %1760 = vmatpush2.msra.mxu0 0.0
        %1761 = vmatprep.subr.mxu0 0.0
        %1762 = vmatpush2.msra.mxu0 0.0
        %1763 = vmatprep.subr.mxu0 0.0
        %1764 = vmatpush2.msra.mxu0 0.0
        %1765 = vmatprep.subr.mxu0 0.0
        %1766 = vmatpush2.msra.mxu0 0.0
        %1767 = vmatprep.subr.mxu0 0.0
        %1768 = vmatpush2.msra.mxu0 0.0
        %1769 = vmatprep.subr.mxu0 0.0
        %1770 = vmatpush2.msra.mxu0 0.0
        %1771 = vmatprep.subr.mxu0 0.0
        %1772 = vmatpush2.msra.mxu0 0.0
        %1773 = vmatprep.subr.mxu0 0.0
        %1774 = vmatpush2.msra.mxu0 0.0
        %1775 = vmatprep.subr.mxu0 0.0
        %1776 = vmatpush2.msra.mxu0 0.0
        %1777 = vmatprep.subr.mxu0 0.0
        %1778 = vmatpush2.msra.mxu0 0.0
        %1779 = vmatprep.subr.mxu0 0.0
        %1780 = vmatpush2.msra.mxu0 0.0
        %1781 = vmatprep.subr.mxu0 0.0
        %1782 = vmatpush2.msra.mxu0 0.0
        %1783 = vmatprep.subr.mxu0 0.0
        %1784 = vmatpush2.msra.mxu0 0.0
        %1785 = vmatprep.mubr.f32.mxu0 0.0
        %1786 = vmatmul.mubr.f32.gmra.mxu0 %v1719
        %v1787 = vpop.f32.mrf.mxu0
        %v1788 = vadd.f32 0.0, %v1787
        %v1789 = vpop.f32.mrf.mxu0
        %1790 = vdwg.mxu0
        %v1791 = vld [vmem:[#allocation13 + $0x18] sm:$0xff]
        %v1793 = vsel %vm900, %v1788, 0
        %1795 = vmatprep.subr.mxu0 0.0
        %1796 = vmatpush1.msra.mxu0 0.0
        %1797 = vmatprep.subr.mxu0 0.0
        %1798 = vmatpush1.msra.mxu0 0.0
        %1799 = vmatprep.subr.mxu0 0.0
        %1800 = vmatpush1.msra.mxu0 0.0
        %1801 = vmatprep.subr.mxu0 0.0
        %1802 = vmatpush1.msra.mxu0 0.0
        %1803 = vmatprep.subr.mxu0 0.0
        %1804 = vmatpush1.msra.mxu0 0.0
        %1805 = vmatprep.subr.mxu0 0.0
        %1806 = vmatpush1.msra.mxu0 0.0
        %1807 = vmatprep.subr.mxu0 0.0
        %1808 = vmatpush1.msra.mxu0 0.0
        %1809 = vmatprep.subr.mxu0 0.0
        %1810 = vmatpush1.msra.mxu0 0.0
        %1811 = vmatprep.subr.mxu0 0.0
        %1812 = vmatpush1.msra.mxu0 0.0
        %1813 = vmatprep.subr.mxu0 0.0
        %1814 = vmatpush1.msra.mxu0 0.0
        %1815 = vmatprep.subr.mxu0 0.0
        %1816 = vmatpush1.msra.mxu0 0.0
        %1817 = vmatprep.subr.mxu0 0.0
        %1818 = vmatpush1.msra.mxu0 0.0
        %1819 = vmatprep.subr.mxu0 0.0
        %1820 = vmatpush1.msra.mxu0 0.0
        %1821 = vmatprep.subr.mxu0 0.0
        %1822 = vmatpush1.msra.mxu0 0.0
        %1823 = vmatprep.subr.mxu0 0.0
        %1824 = vmatpush1.msra.mxu0 0.0
        %1825 = vmatprep.subr.mxu0 0.0
        %1826 = vmatpush1.msra.mxu0 %v1791
        %1827 = vmatprep.subr.mxu0 0.0
        %1828 = vmatpush2.msra.mxu0 0.0
        %1829 = vmatprep.subr.mxu0 0.0
        %1830 = vmatpush2.msra.mxu0 0.0
        %1831 = vmatprep.subr.mxu0 0.0
        %1832 = vmatpush2.msra.mxu0 0.0
        %1833 = vmatprep.subr.mxu0 0.0
        %1834 = vmatpush2.msra.mxu0 0.0
        %1835 = vmatprep.subr.mxu0 0.0
        %1836 = vmatpush2.msra.mxu0 0.0
        %1837 = vmatprep.subr.mxu0 0.0
        %1838 = vmatpush2.msra.mxu0 0.0
        %1839 = vmatprep.subr.mxu0 0.0
        %1840 = vmatpush2.msra.mxu0 0.0
        %1841 = vmatprep.subr.mxu0 0.0
        %1842 = vmatpush2.msra.mxu0 0.0
        %1843 = vmatprep.subr.mxu0 0.0
        %1844 = vmatpush2.msra.mxu0 0.0
        %1845 = vmatprep.subr.mxu0 0.0
        %1846 = vmatpush2.msra.mxu0 0.0
        %1847 = vmatprep.subr.mxu0 0.0
        %1848 = vmatpush2.msra.mxu0 0.0
        %1849 = vmatprep.subr.mxu0 0.0
        %1850 = vmatpush2.msra.mxu0 0.0
        %1851 = vmatprep.subr.mxu0 0.0
        %1852 = vmatpush2.msra.mxu0 0.0
        %1853 = vmatprep.subr.mxu0 0.0
        %1854 = vmatpush2.msra.mxu0 0.0
        %1855 = vmatprep.subr.mxu0 0.0
        %1856 = vmatpush2.msra.mxu0 0.0
        %1857 = vmatprep.subr.mxu0 0.0
        %1858 = vmatpush2.msra.mxu0 0.0
        %1859 = vmatprep.mubr.f32.mxu0 0.0
        %1860 = vmatmul.mubr.f32.gmra.mxu0 %v1793
        %v1861 = vpop.f32.mrf.mxu0
        %v1862 = vadd.f32 0.0, %v1861
        %v1863 = vpop.f32.mrf.mxu0
        %1864 = vdwg.mxu0
        %v1865 = vadd.f32 %v1622, %v1862
        %v1866 = vld [vmem:[%s10] sm:$0x1]
        %v1868 = vlaneseq
        %v1869 = vshrl.u32 %v1868, 7
        %v1870 = vsub.s32 0, %v1869
        %v1871 = vrot.slane %v1866, %v1870
        %v1873 = vadd.f32 %v1865, %v1871
        %v1874 = vadd.f32 %v645, %v1873
        %v1875 = vsel %vm660, %v1874, 0.0
        %1876 = vadd.xlane.f32.xlu0 %v1875
        %v1877 = vpop.xlane.xlu0 %1876
        %v1878 = vrcp.pop 32.0
        %v1879 = vmul.f32 %v1877, %v1878
        %v1880 = vsub.f32 %v1874, %v1879
        %v1881 = vmul.f32 %v1880, %v1880
        %v1882 = vsel %vm660, %v1881, 0.0
        %1883 = vadd.xlane.f32.xlu0 %v1882
        %v1884 = vpop.xlane.xlu0 %1883
        %v1885 = vmul.f32 %v1884, %v1878
        %v1886 = vadd.f32 %v1885, 1e-05
        %v1887 = vrsqrt.pop %v1886
        %v1888 = vmul.f32 %v1880, %v1887
        %v1889 = vld [vmem:[%s11] sm:$0x1]
        %v1891 = vlaneseq
        %v1892 = vshrl.u32 %v1891, 7
        %v1893 = vsub.s32 0, %v1892
        %v1894 = vrot.slane %v1889, %v1893
        %v1896 = vmul.f32 %v1888, %v1894
        %v1897 = vld [vmem:[%s12] sm:$0x1]
        %v1899 = vlaneseq
        %v1900 = vshrl.u32 %v1899, 7
        %v1901 = vsub.s32 0, %v1900
        %v1902 = vrot.slane %v1897, %v1901
        %v1904 = vadd.f32 %v1896, %v1902
        %1905 = vst.msk [vmem:[%s637] sm:$0xff] %vm660, %v1904
        %s1906 = sand.u32 %s354, 1
        %s1907 = scalar_lea.sflag [#allocation4], %s1906
        %s1908 = sand.u32 %s354, 1
        %s1909 = smul.addr %s1908, 8
        %s1910 = scalar_lea.vmem [#allocation14], %s1909
        %s1911 = sand.u32 %s382, 1
        %s1912 = scalar_lea.sflag [#allocation16], %s1911
        %s1913 = sand.u32 %s382, 1
        %s1914 = smul.addr %s1913, 32
        %s1915 = scalar_lea.vmem [#allocation15], %s1914
        // Predicated region
        $region101: #{tpu_custom_call.1} parent=71 // pred_check
          %p1916 = pneg %p364
        $region102: #{tpu_custom_call.1} parent=71 // pred_check_branch
          %1918 = sbr.rel (%p1916) target = $region104
        $region103: #{tpu_custom_call.1} parent=71 // pred_region
          %s1920 = ssub.s32 128, 128
          %1921 = vsyncadd %s1907, %s1920
          %s1922 = sadd.s32 %s45, %s44
          %s1923 = smul.addr %s1922, 128
          %s1924 = scalar_lea.hbm %s13, %s1923
          %s1926 = sshll.u32 %s1910, 4
          %s1927 = int_to_ptr.vmem [resolvable:$true] %s1926
          %1929 = dma.vmem_to_hbm [thread:$0]  %s1927, 128, %s1924, %s1907
        $region104: #{tpu_custom_call.1} parent=71 // pred_fallthru
          _
        // Predicated region
        $region105: #{tpu_custom_call.1} parent=71 // pred_check
          %p1930 = pneg %p392
        $region106: #{tpu_custom_call.1} parent=71 // pred_check_branch
          %1932 = sbr.rel (%p1930) target = $region108
        $region107: #{tpu_custom_call.1} parent=71 // pred_region
          %s1934 = ssub.s32 512, 512
          %1935 = vsyncadd %s1912, %s1934
          %s1936 = smul.addr %s44, 4
          %s1937 = sadd.s32 %s45, %s1936
          %s1938 = smul.addr %s1937, 128
          %s1939 = scalar_lea.hbm %s14, %s1938
          %s1940 = sshll.u32 %s1915, 4
          %s1941 = int_to_ptr.vmem [resolvable:$true] %s1940
          %1946 = dma.vmem_to_hbm [thread:$0]  %s1941, 512, %s1939, %s1912, 128, 128, 8
        $region108: #{tpu_custom_call.1} parent=71 // pred_fallthru
          _
      $region72: #{tpu_custom_call.1} parent=5 // pred_fallthru
        _
      %p1947 = scmp.le.s32.totalorder 2, %s35
      // Predicated region
      $region109: #{tpu_custom_call.1} parent=5 // pred_check
        %p1948 = pneg %p1947
      $region110: #{tpu_custom_call.1} parent=5 // pred_check_branch
        %1950 = sbr.rel (%p1948) target = $region112
      $region111: #{tpu_custom_call.1} parent=5 // pred_region
        %s1951 = ssub.s32 %s35, 2
        // Predicated region
        $region113: #{tpu_custom_call.1} parent=111 // pred_check
          %p1952 = pneg %p370
        $region114: #{tpu_custom_call.1} parent=111 // pred_check_branch
          %1954 = sbr.rel (%p1952) target = $region116
        $region115: #{tpu_custom_call.1} parent=111 // pred_region
          %s1955 = sand.u32 %s355, 1
          %s1956 = scalar_lea.sflag [#allocation4], %s1955
          %s1957 = sand.u32 %s355, 1
          %s1958 = smul.addr %s1957, 8
          %s1959 = scalar_lea.vmem [#allocation14], %s1958
          %1960 = dma.done %s1956, 128
        $region116: #{tpu_custom_call.1} parent=111 // pred_fallthru
          _
        // Predicated region
        $region117: #{tpu_custom_call.1} parent=111 // pred_check
          %p1961 = pneg %p398
        $region118: #{tpu_custom_call.1} parent=111 // pred_check_branch
          %1963 = sbr.rel (%p1961) target = $region120
        $region119: #{tpu_custom_call.1} parent=111 // pred_region
          %s1964 = sand.u32 %s383, 1
          %s1965 = scalar_lea.sflag [#allocation16], %s1964
          %s1966 = sand.u32 %s383, 1
          %s1967 = smul.addr %s1966, 32
          %s1968 = scalar_lea.vmem [#allocation15], %s1967
          %1969 = dma.done %s1965, 512
        $region120: #{tpu_custom_call.1} parent=111 // pred_fallthru
          _
      $region112: #{tpu_custom_call.1} parent=5 // pred_fallthru
        _
    $region6: #{tpu_custom_call.1} parent=1 // loop_footer
      %s39 = sadd.s32 1, %s35
    $region7: #{tpu_custom_call.1} parent=1 // loop_footer_branch
      %34 = sbr.rel target = $region3
    $region8: #{tpu_custom_call.1} parent=1 // loop_exit
      _
    %1970 = vsyncpa [#allocation3], 1
    %s1971 = scalar_lea.sflag [#allocation3], 1
    %1972 = vsyncpa %s1971, 1
    %1973 = vsyncpa [#allocation6], 1
    %s1974 = scalar_lea.sflag [#allocation6], 1
    %1975 = vsyncpa %s1974, 1
    %1976 = vsyncpa [#allocation9], 1
    %1977 = vsyncpa [#allocation12], 1
    %1978 = vsyncpa [#allocation4], 1
    %s1979 = scalar_lea.sflag [#allocation4], 1
    %1980 = vsyncpa %s1979, 1
    %1981 = vsyncpa [#allocation16], 1
    %s1982 = scalar_lea.sflag [#allocation16], 1
    %1983 = vsyncpa %s1982, 1

</llo_original>
